<compile_context>
chip_gen: v7x
topology: tpu7x:2x2x1
jax: 0.10.0
libtpu: 0.0.40
codegen_flags: <defaults>
</compile_context>

<pallas_src>
import functools
import math

import jax
import jax.numpy as jnp
from jax.experimental import pallas as pl
from jax.experimental.pallas import tpu as pltpu

EPS = 1e-5


def _ru(x, m):
    return (x + m - 1) // m * m


# ----------------------------- Pallas matmul kernel -----------------------------

def _mm_kernel(a_ref, w_ref, s_ref, b_ref, o_ref, acc_ref, *, apply_relu):
    """One (TM,TK)x(TK,TN) MXU step; BN affine + ReLU epilogue on last K step."""
    k = pl.program_id(2)

    @pl.when(k == 0)
    def _():
        acc_ref[...] = jnp.zeros_like(acc_ref)

    acc_ref[...] += jnp.dot(a_ref[...], w_ref[...],
                            preferred_element_type=jnp.float32)

    @pl.when(k == pl.num_programs(2) - 1)
    def _():
        r = acc_ref[...] * s_ref[...] + b_ref[...]
        if apply_relu:
            r = jnp.maximum(r, 0.0)
        o_ref[...] = r.astype(o_ref.dtype)


def conv_matmul(a, w, scale, bias, *, relu=True, out_dtype=jnp.bfloat16):
    """(M,K) @ (K,N) in bf16 with f32 accumulation and fused per-output-channel
    affine (inference BatchNorm) + optional ReLU epilogue."""
    M, K = a.shape
    Kw, N = w.shape
    assert K == Kw

    # --- adaptive K tiling: one fat step for small K, 1024/512-wide otherwise ---
    Kp = _ru(K, 128)
    if Kp <= 2048:
        TK = Kp
    elif Kp % 1024 == 0:
        TK = 1024
    else:
        TK = 512
        Kp = _ru(Kp, TK)

    # --- M / N tiling (lane-dense output tiles, big-as-fits blocks) ---
    TM = min(512, _ru(M, 8))
    TN = min(512, _ru(N, 128))
    Mp = _ru(M, TM)
    Np = _ru(N, TN)

    a_p = jnp.pad(a, ((0, Mp - M), (0, Kp - K))).astype(jnp.bfloat16)
    w_p = jnp.pad(w, ((0, Kp - K), (0, Np - N))).astype(jnp.bfloat16)
    s_p = jnp.pad(scale.astype(jnp.float32), (0, Np - N)).reshape(1, Np)
    b_p = jnp.pad(bias.astype(jnp.float32), (0, Np - N)).reshape(1, Np)

    grid = (Mp // TM, Np // TN, Kp // TK)
    out = pl.pallas_call(
        functools.partial(_mm_kernel, apply_relu=relu),
        out_shape=jax.ShapeDtypeStruct((Mp, Np), out_dtype),
        grid=grid,
        in_specs=[pl.BlockSpec((TM, TK), lambda i, j, k: (i, k)),
                  pl.BlockSpec((TK, TN), lambda i, j, k: (k, j)),
                  pl.BlockSpec((1, TN), lambda i, j, k: (0, j)),
                  pl.BlockSpec((1, TN), lambda i, j, k: (0, j))],
        out_specs=pl.BlockSpec((TM, TN), lambda i, j, k: (i, j)),
        scratch_shapes=[pltpu.VMEM((TM, TN), jnp.float32)],
        compiler_params=pltpu.CompilerParams(
            dimension_semantics=("parallel", "parallel", "arbitrary")),
    )(a_p, w_p, s_p, b_p)
    return out[:M, :N]


# ------------------------------ conv glue (im2col) ------------------------------

def extract_patches(x, k, pad):
    """NHWC -> im2col matrix (N*H*W, k*k*C), stride 1, patch order (kh, kw, c)."""
    N, H, W, C = x.shape
    if k == 1:
        return x.reshape(N * H * W, C), (N, H, W)
    xp = jnp.pad(x, ((0, 0), (pad, pad), (pad, pad), (0, 0)))
    taps = []
    for kh in range(k):
        for kw in range(k):
            taps.append(xp[:, kh:kh + H, kw:kw + W, :])
    p = jnp.stack(taps, axis=3)                       # (N, H, W, k*k, C)
    return p.reshape(N * H * W, k * k * C), (N, H, W)


def extract_patches_up2(x, k, pad):
    """im2col of the nearest-x2 upsample of x, WITHOUT materializing the 4x
    upsampled activation: each tap reads source pixel (h//2, w//2) directly."""
    N, H, W, C = x.shape
    Ho, Wo = 2 * H, 2 * W
    rows = jnp.arange(Ho)
    cols = jnp.arange(Wo)
    taps = []
    for kh in range(k):
        src_h = rows + (kh - pad)
        vh = (src_h >= 0) & (src_h < Ho)
        ih = jnp.clip(src_h, 0, Ho - 1) // 2
        for kw in range(k):
            src_w = cols + (kw - pad)
            vw = (src_w >= 0) & (src_w < Wo)
            iw = jnp.clip(src_w, 0, Wo - 1) // 2
            t = x[:, ih][:, :, iw]                    # (N, Ho, Wo, C) gather
            m = (vh[:, None] & vw[None, :])[None, :, :, None]
            taps.append(jnp.where(m, t, jnp.zeros((), x.dtype)))
    p = jnp.stack(taps, axis=3)                       # (N, Ho, Wo, k*k, C)
    return p.reshape(N * Ho * Wo, k * k * C), (N, Ho, Wo)


def conv_bn_relu(x, w, scale, bias, *, k, upsample_in=False,
                 out_dtype=jnp.bfloat16):
    """Conv2d(k, stride=1, pad=(k-1)//2, bias=False) + BN(eval) + ReLU on NHWC.
    If upsample_in, the conv is applied to the nearest-x2 upsample of x."""
    pad = (k - 1) // 2
    if upsample_in:
        a, (N, Ho, Wo) = extract_patches_up2(x, k, pad)
    else:
        a, (N, Ho, Wo) = extract_patches(x, k, pad)
    cout = w.shape[-1]
    y = conv_matmul(a, w.reshape(-1, cout), scale, bias,
                    relu=True, out_dtype=out_dtype)
    return y.reshape(N, Ho, Wo, cout)


# ------------------------------ parameters ------------------------------

class _Keys:
    def __init__(self, seed):
        self._key = jax.random.PRNGKey(seed)

    def __call__(self):
        self._key, k = jax.random.split(self._key)
        return k


def _conv_w(kg, kh, kw, cin, cout):
    std = math.sqrt(2.0 / (kh * kw * cout))
    return jax.random.normal(kg(), (kh, kw, cin, cout), jnp.float32) * std


def _bn_params(c):
    # fresh BatchNorm2d in eval(): gamma=1, beta=0, mean=0, var=1
    scale = jnp.full((c,), 1.0 / math.sqrt(1.0 + EPS), jnp.float32)
    bias = jnp.zeros((c,), jnp.float32)
    return scale, bias


def build_params(seed=0, kernel_size=5):
    """NNConv(kernel_size, dw=False): conv1..conv5 are conv(k) blocks, conv6 is
    pointwise(32, 1)."""
    kg = _Keys(seed)
    cfg = [(1024, 512, kernel_size), (512, 256, kernel_size),
           (256, 128, kernel_size), (128, 64, kernel_size),
           (64, 32, kernel_size), (32, 1, 1)]
    layers = [dict(w=_conv_w(kg, kk, kk, ci, co), bn=_bn_params(co), k=kk)
              for ci, co, kk in cfg]
    return {'layers': layers}


# ------------------------------ forward ------------------------------

def nnconv_forward(params, x_nchw):
    """NNConv.forward: conv1, (up2, conv_i) for i=2..5, up2, conv6."""
    x = jnp.transpose(x_nchw, (0, 2, 3, 1)).astype(jnp.bfloat16)   # NCHW -> NHWC
    layers = params['layers']

    # conv1 (5x5) at input resolution
    l0 = layers[0]
    x = conv_bn_relu(x, l0['w'], *l0['bn'], k=l0['k'])

    # conv2..conv5: nearest-x2 upsample fused into the patch extraction
    for i in range(1, 5):
        li = layers[i]
        x = conv_bn_relu(x, li['w'], *li['bn'], k=li['k'], upsample_in=True)

    # conv6 is 1x1 conv + BN + ReLU (all pointwise) and therefore commutes with
    # nearest upsampling: apply it first (4x cheaper), then upsample the result.
    l5 = layers[5]
    x = conv_bn_relu(x, l5['w'], *l5['bn'], k=l5['k'],
                     out_dtype=jnp.float32)
    x = jnp.repeat(jnp.repeat(x, 2, axis=1), 2, axis=2)            # final nearest x2

    return jnp.transpose(x, (0, 3, 1, 2))                          # NHWC -> NCHW


if __name__ == "__main__":
    key = jax.random.PRNGKey(0)
    # NNConv expects a 1024-channel feature map (encoder output); small spatial.
    x = jax.random.normal(key, (2, 1024, 4, 4), jnp.float32)       # NCHW
    params = build_params(seed=0, kernel_size=5)
    out = nnconv_forward(params, x)
    out = jax.block_until_ready(out)
    assert out.shape == (2, 1, 128, 128), out.shape                # 5x nearest x2
    assert bool(jnp.all(jnp.isfinite(out))), "non-finite output"
    print("KERNEL_OK")
</pallas_src>

<mosaic_0001>
module attributes {stable_mosaic.version = 11 : i64} {
  func.func @_mm_kernel(%arg0: i32, %arg1: i32, %arg2: i32, %arg3: memref<32x1024xbf16, #tpu.memory_space<vmem>>, %arg4: memref<1024x512xbf16, #tpu.memory_space<vmem>>, %arg5: memref<1x512xf32, #tpu.memory_space<vmem>>, %arg6: memref<1x512xf32, #tpu.memory_space<vmem>>, %arg7: memref<32x512xbf16, #tpu.memory_space<vmem>>, %arg8: memref<32x512xf32, #tpu.memory_space<vmem>>) attributes {dimension_semantics = [#tpu.dimension_semantics<parallel>, #tpu.dimension_semantics<parallel>, #tpu.dimension_semantics<arbitrary>], iteration_bounds = array<i64: 1, 1, 25>, scalar_prefetch = 0 : i64, scratch_operands = 1 : i64, tpu.core_type = #tpu.core_type<tc>, window_params = [{transform_indices = @transform_0, window_bounds = array<i64: 32, 1024>}, {transform_indices = @transform_1, window_bounds = array<i64: 1024, 512>}, {transform_indices = @transform_2, window_bounds = array<i64: 1, 512>}, {transform_indices = @transform_3, window_bounds = array<i64: 1, 512>}, {transform_indices = @transform_4, window_bounds = array<i64: 32, 512>}]} {
    %c0_i32 = arith.constant 0 : i32
    %0 = arith.cmpi eq, %arg2, %c0_i32 : i32
    %1 = arith.extui %0 : i1 to i32
    %c0_i32_0 = arith.constant 0 : i32
    %2 = arith.cmpi ne, %1, %c0_i32_0 : i32
    scf.if %2 {
      %cst_9 = arith.constant 0.000000e+00 : f32
      %12 = vector.broadcast %cst_9 : f32 to vector<32x512xf32>
      %c0_10 = arith.constant 0 : index
      %c0_11 = arith.constant 0 : index
      %13 = vector.load %arg8[%c0_10, %c0_11] : memref<32x512xf32, #tpu.memory_space<vmem>>, vector<32x512xf32>
      tpu.vector_store %arg8[%c0_10, %c0_11], %12 {strides = array<i32>} : memref<32x512xf32, #tpu.memory_space<vmem>>, vector<32x512xf32>,
    } else {
    }
    %c0 = arith.constant 0 : index
    %c0_1 = arith.constant 0 : index
    %3 = vector.load %arg8[%c0, %c0_1] : memref<32x512xf32, #tpu.memory_space<vmem>>, vector<32x512xf32>
    %c0_2 = arith.constant 0 : index
    %c0_3 = arith.constant 0 : index
    %4 = vector.load %arg3[%c0_2, %c0_3] : memref<32x1024xbf16, #tpu.memory_space<vmem>>, vector<32x1024xbf16>
    %c0_4 = arith.constant 0 : index
    %c0_5 = arith.constant 0 : index
    %5 = vector.load %arg4[%c0_4, %c0_5] : memref<1024x512xbf16, #tpu.memory_space<vmem>>, vector<1024x512xbf16>
    %cst = arith.constant dense<0.000000e+00> : vector<32x512xf32>
    %6 = tpu.matmul %4, %5, %cst {dimension_numbers = #tpu.dot_dimension_numbers<[1], [0], [0], [1], [0, 0, 1, 1], [], []>} : vector<32x1024xbf16>, vector<1024x512xbf16>, vector<32x512xf32> -> vector<32x512xf32>
    %7 = arith.addf %3, %6 : vector<32x512xf32>
    %c0_6 = arith.constant 0 : index
    %c0_7 = arith.constant 0 : index
    %8 = vector.load %arg8[%c0_6, %c0_7] : memref<32x512xf32, #tpu.memory_space<vmem>>, vector<32x512xf32>
    tpu.vector_store %arg8[%c0_6, %c0_7], %7 {strides = array<i32>} : memref<32x512xf32, #tpu.memory_space<vmem>>, vector<32x512xf32>,
    %c24_i32 = arith.constant 24 : i32
    %9 = arith.cmpi eq, %arg2, %c24_i32 : i32
    %10 = arith.extui %9 : i1 to i32
    %c0_i32_8 = arith.constant 0 : i32
    %11 = arith.cmpi ne, %10, %c0_i32_8 : i32
    scf.if %11 {
      %c0_9 = arith.constant 0 : index
      %c0_10 = arith.constant 0 : index
      %12 = vector.load %arg8[%c0_9, %c0_10] : memref<32x512xf32, #tpu.memory_space<vmem>>, vector<32x512xf32>
      %c0_11 = arith.constant 0 : index
      %c0_12 = arith.constant 0 : index
      %13 = vector.load %arg5[%c0_11, %c0_12] : memref<1x512xf32, #tpu.memory_space<vmem>>, vector<1x512xf32>
      %14 = vector.broadcast %13 : vector<1x512xf32> to vector<32x512xf32>
      %15 = arith.mulf %12, %14 : vector<32x512xf32>
      %c0_13 = arith.constant 0 : index
      %c0_14 = arith.constant 0 : index
      %16 = vector.load %arg6[%c0_13, %c0_14] : memref<1x512xf32, #tpu.memory_space<vmem>>, vector<1x512xf32>
      %17 = vector.broadcast %16 : vector<1x512xf32> to vector<32x512xf32>
      %18 = arith.addf %15, %17 : vector<32x512xf32>
      %cst_15 = arith.constant 0.000000e+00 : f32
      %19 = vector.broadcast %cst_15 : f32 to vector<32x512xf32>
      %20 = arith.maximumf %18, %19 : vector<32x512xf32>
      %21 = arith.truncf %20 : vector<32x512xf32> to vector<32x512xbf16>
      %c0_16 = arith.constant 0 : index
      %c0_17 = arith.constant 0 : index
      %22 = vector.load %arg7[%c0_16, %c0_17] : memref<32x512xbf16, #tpu.memory_space<vmem>>, vector<32x512xbf16>
      tpu.vector_store %arg7[%c0_16, %c0_17], %21 {strides = array<i32>} : memref<32x512xbf16, #tpu.memory_space<vmem>>, vector<32x512xbf16>,
    } else {
    }
    return
  }
  func.func @transform_0(%arg0: i32, %arg1: i32, %arg2: i32) -> (i32, i32) {
    %c0_i32 = arith.constant 0 : i32
    return %arg0, %arg2 : i32, i32
  }
  func.func @transform_1(%arg0: i32, %arg1: i32, %arg2: i32) -> (i32, i32) {
    %c0_i32 = arith.constant 0 : i32
    return %arg2, %arg1 : i32, i32
  }
  func.func @transform_2(%arg0: i32, %arg1: i32, %arg2: i32) -> (i32, i32) {
    %c0_i32 = arith.constant 0 : i32
    %c0_i32_0 = arith.constant 0 : i32
    return %c0_i32, %arg1 : i32, i32
  }
  func.func @transform_3(%arg0: i32, %arg1: i32, %arg2: i32) -> (i32, i32) {
    %c0_i32 = arith.constant 0 : i32
    %c0_i32_0 = arith.constant 0 : i32
    return %c0_i32, %arg1 : i32, i32
  }
  func.func @transform_4(%arg0: i32, %arg1: i32, %arg2: i32) -> (i32, i32) {
    %c0_i32 = arith.constant 0 : i32
    return %arg0, %arg1 : i32, i32
  }
}

</mosaic_0001>

<llo_original>
// kernel: tpu_custom_call.1
$region0: #{tpu_custom_call.1}
  #allocation0 [shape = 'u32[]', space=smem, size = 0x4, offset = 0x4, fixed_abs, tag = 'smem constant byte address 0x4 - core index']
  #allocation1 [shape = 'u32[144,128]{1,0:T(1,128)}', space=vmem, size = 0x12000, scoped, tag = 'internal scratch']
  #allocation2 [shape = 'f32[32,512]{1,0:T(8,128)}', space=vmem, size = 0x10000, scoped, tag = 'scratch operand']
  %s0 = inlined_call_operand.hbm [shape: bf16[32,25600], index: 0, kind: input, shape index: {}]
  %s1 = inlined_call_operand.hbm [shape: bf16[25600,512], index: 1, kind: input, shape index: {}]
  %s2 = inlined_call_operand.hbm [shape: f32[1,512], index: 2, kind: input, shape index: {}]
  %s3 = inlined_call_operand.hbm [shape: f32[1,512], index: 3, kind: input, shape index: {}]
  %s4 = inlined_call_operand.hbm [shape: bf16[32,512], index: 4, kind: output, shape index: {}]
  %s5 = sld [smem:[#allocation0]]
  $region73: #{tpu_custom_call.1} parent=0
    _
  %s7 = ssub.s32 1, %s5
  %s8 = scalar_select 0, %s7, %s5
  $region1: #{tpu_custom_call.1} parent=0
    #allocation3 [shape = 'u8[131072]{0}', space=vmem, size = 0x20000, scoped, tag = 'input window, operand 0']
    #allocation4 [shape = 's32[2]{0}', space=sflag, size = 0x8, scoped, tag = 'scoped memory for tpu_custom_call.1']
    #allocation5 [shape = 's32[2]{0}', space=sflag, size = 0x8, scoped, tag = 'scoped memory for tpu_custom_call.1']
    #allocation6 [shape = 'u8[2097152]{0}', space=vmem, size = 0x200000, scoped, tag = 'input window, operand 1']
    #allocation7 [shape = 's32[2]{0}', space=sflag, size = 0x8, scoped, tag = 'scoped memory for tpu_custom_call.1']
    #allocation8 [shape = 'u8[2048]{0}', space=vmem, size = 0x800, scoped, tag = 'input window, operand 2, single buffered']
    #allocation9 [shape = 'u8[2048]{0}', space=vmem, size = 0x800, scoped, tag = 'input window, operand 3, single buffered']
    #allocation10 [shape = 's32[1]{0}', space=sflag, size = 0x4, scoped, tag = 'scoped memory for tpu_custom_call.1']
    #allocation11 [shape = 'u8[32768]{0}', space=vmem, size = 0x8000, scoped, tag = 'output window, operand 0, single buffered']
    %9 = vsyncpa [#allocation4], 0
    %s10 = scalar_lea.sflag [#allocation4], 1
    %11 = vsyncpa %s10, 0
    %12 = vsyncpa [#allocation7], 0
    %s13 = scalar_lea.sflag [#allocation7], 1
    %14 = vsyncpa %s13, 0
    %15 = vsyncpa [#allocation10], 0
    %16 = vsyncpa [#allocation5], 0
    loop: start=0, step=1, limit=27
    $region2: #{tpu_custom_call.1} parent=1 // loop_pre_header
      _
    $region3: #{tpu_custom_call.1} parent=1 // loop_header
      %s18 = sphi 0, %s22
      %p19 = scmp.ge.s32.totalorder %s18, 27
      %s25 = sphi 0, %s44
      %s26 = sphi 0, %s40
      %s27 = sphi 0, %s36
      %s28 = sphi 0, %s25
      %s29 = sphi 0, %s26
      %s30 = sphi 0, %s27
      %s31 = sphi 0, %s28
      %s32 = sphi 0, %s29
      %s33 = sphi 0, %s30
      %s49 = sphi 0, %s51
      %s52 = sphi 0, %s49
      %s53 = sphi 0, %s52
      %s69 = sphi 0, %s53
      %s77 = sphi 0, %s79
      %s80 = sphi 0, %s77
      %s81 = sphi 0, %s80
      %s97 = sphi 0, %s81
      %s103 = sphi 0, %s105
      %s106 = sphi 0, %s103
      %s107 = sphi 0, %s106
      %s123 = sphi 0, %s107
      %s129 = sphi 0, %s131
      %s132 = sphi 0, %s129
      %s133 = sphi 0, %s132
      %s149 = sphi 0, %s133
      %s157 = sphi 0, %s159
      %s160 = sphi 0, %s157
      %s161 = sphi 0, %s160
      %s177 = sphi 0, %s161
    $region4: #{tpu_custom_call.1} parent=1 // loop_header_branch
      %21 = sbr.rel (%p19) target = $region8
    $region5: #{tpu_custom_call.1} parent=1 // loop_body
      %s23 = ssub.s32 %s18, 1
      %s24 = ssub.s32 %s18, 2
      %s34 = sadd.s32 1, %s27
      %p35 = scmp.ge.s32.totalorder %s34, 25
      %s36 = scalar_select %p35, 0, %s34
      %s37 = sadd.s32 1, %s26
      %s38 = scalar_select %p35, %s37, %s26
      %p39 = scmp.ge.s32.totalorder %s38, 1
      %s40 = scalar_select %p39, 0, %s38
      %s41 = sadd.s32 1, %s25
      %s42 = scalar_select %p39, %s41, %s25
      %p43 = scmp.ge.s32.totalorder %s42, 1
      %s44 = scalar_select %p43, 0, %s42
      %s45 = ssub.s32 %s25, %s44
      %s46 = ssub.s32 %s27, %s36
      %s47 = sor.u32 %s45, %s46
      %p48 = scmp.eq.s32.totalorder %s47, 0
      %s50 = sadd.s32 %s49, 1
      %s51 = scalar_select %p48, %s49, %s50
      %p54 = pneg %p48
      %p55 = scmp.eq.s32.totalorder %s18, 24
      %p56 = por %p54, %p55
      %p57 = scmp.ne.s32.totalorder %s49, %s52
      %p58 = scmp.eq.s32.totalorder %s18, 0
      %p59 = por %p57, %p58
      %p60 = scmp.ne.s32.totalorder %s49, %s52
      %p61 = scmp.eq.s32.totalorder %s23, 24
      %p62 = por %p60, %p61
      %p63 = scmp.ne.s32.totalorder %s52, %s53
      %p64 = scmp.eq.s32.totalorder %s23, 0
      %p65 = por %p63, %p64
      %p66 = scmp.ne.s32.totalorder %s52, %s53
      %p67 = scmp.eq.s32.totalorder %s24, 24
      %p68 = por %p66, %p67
      %p70 = scmp.ne.s32.totalorder %s53, %s69
      %p71 = scmp.eq.s32.totalorder %s24, 0
      %p72 = por %p70, %p71
      %s73 = ssub.s32 %s27, %s36
      %s74 = ssub.s32 %s26, %s40
      %s75 = sor.u32 %s73, %s74
      %p76 = scmp.eq.s32.totalorder %s75, 0
      %s78 = sadd.s32 %s77, 1
      %s79 = scalar_select %p76, %s77, %s78
      %p82 = pneg %p76
      %p83 = scmp.eq.s32.totalorder %s18, 24
      %p84 = por %p82, %p83
      %p85 = scmp.ne.s32.totalorder %s77, %s80
      %p86 = scmp.eq.s32.totalorder %s18, 0
      %p87 = por %p85, %p86
      %p88 = scmp.ne.s32.totalorder %s77, %s80
      %p89 = scmp.eq.s32.totalorder %s23, 24
      %p90 = por %p88, %p89
      %p91 = scmp.ne.s32.totalorder %s80, %s81
      %p92 = scmp.eq.s32.totalorder %s23, 0
      %p93 = por %p91, %p92
      %p94 = scmp.ne.s32.totalorder %s80, %s81
      %p95 = scmp.eq.s32.totalorder %s24, 24
      %p96 = por %p94, %p95
      %p98 = scmp.ne.s32.totalorder %s81, %s97
      %p99 = scmp.eq.s32.totalorder %s24, 0
      %p100 = por %p98, %p99
      %s101 = ssub.s32 %s26, %s40
      %p102 = scmp.eq.s32.totalorder %s101, 0
      %s104 = sadd.s32 %s103, 1
      %s105 = scalar_select %p102, %s103, %s104
      %p108 = pneg %p102
      %p109 = scmp.eq.s32.totalorder %s18, 24
      %p110 = por %p108, %p109
      %p111 = scmp.ne.s32.totalorder %s103, %s106
      %p112 = scmp.eq.s32.totalorder %s18, 0
      %p113 = por %p111, %p112
      %p114 = scmp.ne.s32.totalorder %s103, %s106
      %p115 = scmp.eq.s32.totalorder %s23, 24
      %p116 = por %p114, %p115
      %p117 = scmp.ne.s32.totalorder %s106, %s107
      %p118 = scmp.eq.s32.totalorder %s23, 0
      %p119 = por %p117, %p118
      %p120 = scmp.ne.s32.totalorder %s106, %s107
      %p121 = scmp.eq.s32.totalorder %s24, 24
      %p122 = por %p120, %p121
      %p124 = scmp.ne.s32.totalorder %s107, %s123
      %p125 = scmp.eq.s32.totalorder %s24, 0
      %p126 = por %p124, %p125
      %s127 = ssub.s32 %s26, %s40
      %p128 = scmp.eq.s32.totalorder %s127, 0
      %s130 = sadd.s32 %s129, 1
      %s131 = scalar_select %p128, %s129, %s130
      %p134 = pneg %p128
      %p135 = scmp.eq.s32.totalorder %s18, 24
      %p136 = por %p134, %p135
      %p137 = scmp.ne.s32.totalorder %s129, %s132
      %p138 = scmp.eq.s32.totalorder %s18, 0
      %p139 = por %p137, %p138
      %p140 = scmp.ne.s32.totalorder %s129, %s132
      %p141 = scmp.eq.s32.totalorder %s23, 24
      %p142 = por %p140, %p141
      %p143 = scmp.ne.s32.totalorder %s132, %s133
      %p144 = scmp.eq.s32.totalorder %s23, 0
      %p145 = por %p143, %p144
      %p146 = scmp.ne.s32.totalorder %s132, %s133
      %p147 = scmp.eq.s32.totalorder %s24, 24
      %p148 = por %p146, %p147
      %p150 = scmp.ne.s32.totalorder %s133, %s149
      %p151 = scmp.eq.s32.totalorder %s24, 0
      %p152 = por %p150, %p151
      %s153 = ssub.s32 %s25, %s44
      %s154 = ssub.s32 %s26, %s40
      %s155 = sor.u32 %s153, %s154
      %p156 = scmp.eq.s32.totalorder %s155, 0
      %s158 = sadd.s32 %s157, 1
      %s159 = scalar_select %p156, %s157, %s158
      %p162 = pneg %p156
      %p163 = scmp.eq.s32.totalorder %s18, 24
      %p164 = por %p162, %p163
      %p165 = scmp.ne.s32.totalorder %s157, %s160
      %p166 = scmp.eq.s32.totalorder %s18, 0
      %p167 = por %p165, %p166
      %p168 = scmp.ne.s32.totalorder %s157, %s160
      %p169 = scmp.eq.s32.totalorder %s23, 24
      %p170 = por %p168, %p169
      %p171 = scmp.ne.s32.totalorder %s160, %s161
      %p172 = scmp.eq.s32.totalorder %s23, 0
      %p173 = por %p171, %p172
      %p174 = scmp.ne.s32.totalorder %s160, %s161
      %p175 = scmp.eq.s32.totalorder %s24, 24
      %p176 = por %p174, %p175
      %p178 = scmp.ne.s32.totalorder %s161, %s177
      %p179 = scmp.eq.s32.totalorder %s24, 0
      %p180 = por %p178, %p179
      %p181 = scmp.le.s32.totalorder 1, %s18
      %p182 = scmp.lt.s32.totalorder %s18, 26
      %p183 = pnand %p181, %p182
      %p184 = pneg %p183
      // Predicated region
      $region9: #{tpu_custom_call.1} parent=5 // pred_check
        _
      $region10: #{tpu_custom_call.1} parent=5 // pred_check_branch
        %186 = sbr.rel (%p183) target = $region12
      $region11: #{tpu_custom_call.1} parent=5 // pred_region
        %s187 = ssub.s32 %s18, 1
        // Predicated region
        $region13: #{tpu_custom_call.1} parent=11 // pred_check
          %p188 = pneg %p119
        $region14: #{tpu_custom_call.1} parent=11 // pred_check_branch
          %190 = sbr.rel (%p188) target = $region16
        $region15: #{tpu_custom_call.1} parent=11 // pred_region
          %s191 = smul.u32 4, %s29
          %s193 = ssub.s32 64, 64
          %194 = vsyncadd [#allocation7], %s193
          %s195 = smul.addr %s191, 16
          %s196 = scalar_lea.hbm %s2, %s195
          %s198 = sshll.u32 [#allocation8], 4
          %s199 = int_to_ptr.vmem [resolvable:$true] %s198
          %201 = dma.hbm_to_vmem [thread:$0]  %s196, 64, %s199, [#allocation7]
        $region16: #{tpu_custom_call.1} parent=11 // pred_fallthru
          _
        // Predicated region
        $region17: #{tpu_custom_call.1} parent=11 // pred_check
          %p202 = pneg %p145
        $region18: #{tpu_custom_call.1} parent=11 // pred_check_branch
          %204 = sbr.rel (%p202) target = $region20
        $region19: #{tpu_custom_call.1} parent=11 // pred_region
          %s205 = smul.u32 4, %s29
          %s207 = ssub.s32 64, 64
          %208 = vsyncadd [#allocation10], %s207
          %s209 = smul.addr %s205, 16
          %s210 = scalar_lea.hbm %s3, %s209
          %s212 = sshll.u32 [#allocation9], 4
          %s213 = int_to_ptr.vmem [resolvable:$true] %s212
          %215 = dma.hbm_to_vmem [thread:$0]  %s210, 64, %s213, [#allocation10]
        $region20: #{tpu_custom_call.1} parent=11 // pred_fallthru
          _
      $region12: #{tpu_custom_call.1} parent=5 // pred_fallthru
        _
      %p216 = scmp.lt.s32.totalorder %s18, 25
      // Predicated region
      $region21: #{tpu_custom_call.1} parent=5 // pred_check
        %p217 = pneg %p216
      $region22: #{tpu_custom_call.1} parent=5 // pred_check_branch
        %219 = sbr.rel (%p217) target = $region24
      $region23: #{tpu_custom_call.1} parent=5 // pred_region
        // Predicated region
        $region25: #{tpu_custom_call.1} parent=23 // pred_check
          %p220 = pneg %p59
        $region26: #{tpu_custom_call.1} parent=23 // pred_check_branch
          %222 = sbr.rel (%p220) target = $region28
        $region27: #{tpu_custom_call.1} parent=23 // pred_region
          %s223 = sand.u32 %s49, 1
          %s224 = scalar_lea.sflag [#allocation4], %s223
          %s225 = sand.u32 %s49, 1
          %s226 = smul.addr %s225, 128
          %s227 = scalar_lea.vmem [#allocation3], %s226
          %s228 = smul.u32 4, %s25
          %s229 = smul.u32 8, %s27
          %s231 = ssub.s32 2048, 2048
          %232 = vsyncadd %s224, %s231
          %s233 = smul.addr %s228, 200
          %s234 = sadd.s32 %s229, %s233
          %s235 = smul.addr %s234, 64
          %s236 = scalar_lea.hbm %s0, %s235
          %s237 = sshll.u32 %s227, 4
          %s238 = int_to_ptr.vmem [resolvable:$true] %s237
          %243 = dma.hbm_to_vmem [thread:$0]  %s236, 2048, %s238, %s224, 12800, 512, 32
        $region28: #{tpu_custom_call.1} parent=23 // pred_fallthru
          _
        // Predicated region
        $region29: #{tpu_custom_call.1} parent=23 // pred_check
          %p244 = pneg %p87
        $region30: #{tpu_custom_call.1} parent=23 // pred_check_branch
          %246 = sbr.rel (%p244) target = $region32
        $region31: #{tpu_custom_call.1} parent=23 // pred_region
          %s247 = sand.u32 %s18, 1
          %s248 = scalar_lea.sflag [#allocation7], %s247
          %s249 = sand.u32 %s77, 1
          %s250 = smul.addr %s249, 2048
          %s251 = scalar_lea.vmem [#allocation6], %s250
          %s252 = smul.u32 128, %s27
          %s253 = smul.u32 4, %s26
          %s255 = ssub.s32 32768, 32768
          %256 = vsyncadd %s248, %s255
          %s257 = smul.addr %s252, 4
          %s258 = sadd.s32 %s253, %s257
          %s259 = smul.addr %s258, 64
          %s260 = scalar_lea.hbm %s1, %s259
          %s261 = sshll.u32 %s251, 4
          %s262 = int_to_ptr.vmem [resolvable:$true] %s261
          %267 = dma.hbm_to_vmem [thread:$0]  %s260, 32768, %s262, %s248, 256, 256, 16
        $region32: #{tpu_custom_call.1} parent=23 // pred_fallthru
          _
      $region24: #{tpu_custom_call.1} parent=5 // pred_fallthru
        _
      %p268 = scmp.le.s32.totalorder 1, %s18
      %p269 = scmp.lt.s32.totalorder %s18, 26
      %p270 = pnand %p268, %p269
      %p271 = pneg %p270
      // Predicated region
      $region33: #{tpu_custom_call.1} parent=5 // pred_check
        _
      $region34: #{tpu_custom_call.1} parent=5 // pred_check_branch
        %273 = sbr.rel (%p270) target = $region36
      $region35: #{tpu_custom_call.1} parent=5 // pred_region
        %s274 = ssub.s32 %s18, 1
        %s275 = sand.u32 %s52, 1
        %s276 = scalar_lea.sflag [#allocation4], %s275
        %s277 = sand.u32 %s52, 1
        %s278 = smul.addr %s277, 128
        %s279 = scalar_lea.vmem [#allocation3], %s278
        // Predicated region
        $region37: #{tpu_custom_call.1} parent=35 // pred_check
          %p280 = pneg %p65
        $region38: #{tpu_custom_call.1} parent=35 // pred_check_branch
          %282 = sbr.rel (%p280) target = $region40
        $region39: #{tpu_custom_call.1} parent=35 // pred_region
          %283 = dma.done %s276, 2048
        $region40: #{tpu_custom_call.1} parent=35 // pred_fallthru
          _
        %s284 = sand.u32 %s23, 1
        %s285 = scalar_lea.sflag [#allocation7], %s284
        %s286 = sand.u32 %s80, 1
        %s287 = smul.addr %s286, 2048
        %s288 = scalar_lea.vmem [#allocation6], %s287
        // Predicated region
        $region41: #{tpu_custom_call.1} parent=35 // pred_check
          %p289 = pneg %p93
        $region42: #{tpu_custom_call.1} parent=35 // pred_check_branch
          %291 = sbr.rel (%p289) target = $region44
        $region43: #{tpu_custom_call.1} parent=35 // pred_region
          %292 = dma.done %s285, 32768
        $region44: #{tpu_custom_call.1} parent=35 // pred_fallthru
          _
        // Predicated region
        $region45: #{tpu_custom_call.1} parent=35 // pred_check
          %p293 = pneg %p119
        $region46: #{tpu_custom_call.1} parent=35 // pred_check_branch
          %295 = sbr.rel (%p293) target = $region48
        $region47: #{tpu_custom_call.1} parent=35 // pred_region
          %296 = dma.done [#allocation7], 64
        $region48: #{tpu_custom_call.1} parent=35 // pred_fallthru
          _
        // Predicated region
        $region49: #{tpu_custom_call.1} parent=35 // pred_check
          %p297 = pneg %p145
        $region50: #{tpu_custom_call.1} parent=35 // pred_check_branch
          %299 = sbr.rel (%p297) target = $region52
        $region51: #{tpu_custom_call.1} parent=35 // pred_region
          %300 = dma.done [#allocation10], 64
        $region52: #{tpu_custom_call.1} parent=35 // pred_fallthru
          _
        %s301 = sand.u32 %s52, 1
        %s302 = scalar_lea.sflag [#allocation4], %s301
        %s303 = sand.u32 %s52, 1
        %s304 = smul.addr %s303, 128
        %s305 = scalar_lea.vmem [#allocation3], %s304
        %p306 = pneg %p65
        %p307 = pneg %p62
        %s308 = sand.u32 %s23, 1
        %s309 = scalar_lea.sflag [#allocation7], %s308
        %s310 = sand.u32 %s80, 1
        %s311 = smul.addr %s310, 2048
        %s312 = scalar_lea.vmem [#allocation6], %s311
        %p313 = pneg %p93
        %p314 = pneg %p90
        %p315 = pneg %p119
        %p316 = pneg %p116
        %p317 = pneg %p145
        %p318 = pneg %p142
        %p319 = pneg %p173
        %p320 = pneg %p170
        %s321 = smul.u32 4, %s28
        %s322 = smul.u32 8, %s30
        %s323 = smul.u32 128, %s30
        %s324 = smul.u32 4, %s29
        %s325 = smul.u32 4, %s29
        %s326 = smul.u32 4, %s29
        %s327 = smul.u32 4, %s28
        %s328 = smul.u32 4, %s29
        %p329 = scmp.eq.s32.totalorder %s30, 0
        // Predicated region
        $region53: #{tpu_custom_call.1} parent=35 // pred_check
          %p330 = pneg %p329
        $region54: #{tpu_custom_call.1} parent=35 // pred_check_branch
          %332 = sbr.rel (%p330) target = $region56
        $region55: #{tpu_custom_call.1} parent=35 // pred_region
          %333 = vst [vmem:[#allocation2] sm:$0xff] 0.0
          %334 = vst [vmem:[#allocation2 + $0x8] sm:$0xff] 0.0
          %335 = vst [vmem:[#allocation2 + $0x10] sm:$0xff] 0.0
          %336 = vst [vmem:[#allocation2 + $0x18] sm:$0xff] 0.0
          %337 = vst [vmem:[#allocation2 + $0x20] sm:$0xff] 0.0
          %338 = vst [vmem:[#allocation2 + $0x28] sm:$0xff] 0.0
          %339 = vst [vmem:[#allocation2 + $0x30] sm:$0xff] 0.0
          %340 = vst [vmem:[#allocation2 + $0x38] sm:$0xff] 0.0
          %341 = vst [vmem:[#allocation2 + $0x40] sm:$0xff] 0.0
          %342 = vst [vmem:[#allocation2 + $0x48] sm:$0xff] 0.0
          %343 = vst [vmem:[#allocation2 + $0x50] sm:$0xff] 0.0
          %344 = vst [vmem:[#allocation2 + $0x58] sm:$0xff] 0.0
          %345 = vst [vmem:[#allocation2 + $0x60] sm:$0xff] 0.0
          %346 = vst [vmem:[#allocation2 + $0x68] sm:$0xff] 0.0
          %347 = vst [vmem:[#allocation2 + $0x70] sm:$0xff] 0.0
          %348 = vst [vmem:[#allocation2 + $0x78] sm:$0xff] 0.0
        $region56: #{tpu_custom_call.1} parent=35 // pred_fallthru
          _
        %v349 = vld [vmem:[#allocation2] sm:$0xff]
        %v350 = vld [vmem:[#allocation2 + $0x8] sm:$0xff]
        %v351 = vld [vmem:[#allocation2 + $0x10] sm:$0xff]
        %v352 = vld [vmem:[#allocation2 + $0x18] sm:$0xff]
        %v353 = vld [vmem:[#allocation2 + $0x20] sm:$0xff]
        %v354 = vld [vmem:[#allocation2 + $0x28] sm:$0xff]
        %v355 = vld [vmem:[#allocation2 + $0x30] sm:$0xff]
        %v356 = vld [vmem:[#allocation2 + $0x38] sm:$0xff]
        %v357 = vld [vmem:[#allocation2 + $0x40] sm:$0xff]
        %v358 = vld [vmem:[#allocation2 + $0x48] sm:$0xff]
        %v359 = vld [vmem:[#allocation2 + $0x50] sm:$0xff]
        %v360 = vld [vmem:[#allocation2 + $0x58] sm:$0xff]
        %v361 = vld [vmem:[#allocation2 + $0x60] sm:$0xff]
        %v362 = vld [vmem:[#allocation2 + $0x68] sm:$0xff]
        %v363 = vld [vmem:[#allocation2 + $0x70] sm:$0xff]
        %v364 = vld [vmem:[#allocation2 + $0x78] sm:$0xff]
        %v365 = vld [vmem:[%s279] sm:$0xff]
        %v366 = vld [vmem:[%s279 + $0x8] sm:$0xff]
        %v367 = vld [vmem:[%s279 + $0x10] sm:$0xff]
        %v368 = vld [vmem:[%s279 + $0x18] sm:$0xff]
        %v369 = vld [vmem:[%s279 + $0x20] sm:$0xff]
        %v370 = vld [vmem:[%s279 + $0x28] sm:$0xff]
        %v371 = vld [vmem:[%s279 + $0x30] sm:$0xff]
        %v372 = vld [vmem:[%s279 + $0x38] sm:$0xff]
        %v373 = vld [vmem:[%s279 + $0x40] sm:$0xff]
        %v374 = vld [vmem:[%s279 + $0x48] sm:$0xff]
        %v375 = vld [vmem:[%s279 + $0x50] sm:$0xff]
        %v376 = vld [vmem:[%s279 + $0x58] sm:$0xff]
        %v377 = vld [vmem:[%s279 + $0x60] sm:$0xff]
        %v378 = vld [vmem:[%s279 + $0x68] sm:$0xff]
        %v379 = vld [vmem:[%s279 + $0x70] sm:$0xff]
        %v380 = vld [vmem:[%s279 + $0x78] sm:$0xff]
        %v381 = vld [vmem:[%s288] sm:$0xff]
        %v382 = vld [vmem:[%s288 + $0x8] sm:$0xff]
        %v383 = vld [vmem:[%s288 + $0x10] sm:$0xff]
        %v384 = vld [vmem:[%s288 + $0x18] sm:$0xff]
        %v385 = vld [vmem:[%s288 + $0x20] sm:$0xff]
        %v386 = vld [vmem:[%s288 + $0x28] sm:$0xff]
        %v387 = vld [vmem:[%s288 + $0x30] sm:$0xff]
        %v388 = vld [vmem:[%s288 + $0x38] sm:$0xff]
        %v389 = vld [vmem:[%s288 + $0x40] sm:$0xff]
        %v390 = vld [vmem:[%s288 + $0x48] sm:$0xff]
        %v391 = vld [vmem:[%s288 + $0x50] sm:$0xff]
        %v392 = vld [vmem:[%s288 + $0x58] sm:$0xff]
        %v393 = vld [vmem:[%s288 + $0x60] sm:$0xff]
        %v394 = vld [vmem:[%s288 + $0x68] sm:$0xff]
        %v395 = vld [vmem:[%s288 + $0x70] sm:$0xff]
        %v396 = vld [vmem:[%s288 + $0x78] sm:$0xff]
        %v397 = vld [vmem:[%s288 + $0x80] sm:$0xff]
        %v398 = vld [vmem:[%s288 + $0x88] sm:$0xff]
        %v399 = vld [vmem:[%s288 + $0x90] sm:$0xff]
        %v400 = vld [vmem:[%s288 + $0x98] sm:$0xff]
        %v401 = vld [vmem:[%s288 + $0xa0] sm:$0xff]
        %v402 = vld [vmem:[%s288 + $0xa8] sm:$0xff]
        %v403 = vld [vmem:[%s288 + $0xb0] sm:$0xff]
        %v404 = vld [vmem:[%s288 + $0xb8] sm:$0xff]
        %v405 = vld [vmem:[%s288 + $0xc0] sm:$0xff]
        %v406 = vld [vmem:[%s288 + $0xc8] sm:$0xff]
        %v407 = vld [vmem:[%s288 + $0xd0] sm:$0xff]
        %v408 = vld [vmem:[%s288 + $0xd8] sm:$0xff]
        %v409 = vld [vmem:[%s288 + $0xe0] sm:$0xff]
        %v410 = vld [vmem:[%s288 + $0xe8] sm:$0xff]
        %v411 = vld [vmem:[%s288 + $0xf0] sm:$0xff]
        %v412 = vld [vmem:[%s288 + $0xf8] sm:$0xff]
        %v413 = vld [vmem:[%s288 + $0x100] sm:$0xff]
        %v414 = vld [vmem:[%s288 + $0x108] sm:$0xff]
        %v415 = vld [vmem:[%s288 + $0x110] sm:$0xff]
        %v416 = vld [vmem:[%s288 + $0x118] sm:$0xff]
        %v417 = vld [vmem:[%s288 + $0x120] sm:$0xff]
        %v418 = vld [vmem:[%s288 + $0x128] sm:$0xff]
        %v419 = vld [vmem:[%s288 + $0x130] sm:$0xff]
        %v420 = vld [vmem:[%s288 + $0x138] sm:$0xff]
        %v421 = vld [vmem:[%s288 + $0x140] sm:$0xff]
        %v422 = vld [vmem:[%s288 + $0x148] sm:$0xff]
        %v423 = vld [vmem:[%s288 + $0x150] sm:$0xff]
        %v424 = vld [vmem:[%s288 + $0x158] sm:$0xff]
        %v425 = vld [vmem:[%s288 + $0x160] sm:$0xff]
        %v426 = vld [vmem:[%s288 + $0x168] sm:$0xff]
        %v427 = vld [vmem:[%s288 + $0x170] sm:$0xff]
        %v428 = vld [vmem:[%s288 + $0x178] sm:$0xff]
        %v429 = vld [vmem:[%s288 + $0x180] sm:$0xff]
        %v430 = vld [vmem:[%s288 + $0x188] sm:$0xff]
        %v431 = vld [vmem:[%s288 + $0x190] sm:$0xff]
        %v432 = vld [vmem:[%s288 + $0x198] sm:$0xff]
        %v433 = vld [vmem:[%s288 + $0x1a0] sm:$0xff]
        %v434 = vld [vmem:[%s288 + $0x1a8] sm:$0xff]
        %v435 = vld [vmem:[%s288 + $0x1b0] sm:$0xff]
        %v436 = vld [vmem:[%s288 + $0x1b8] sm:$0xff]
        %v437 = vld [vmem:[%s288 + $0x1c0] sm:$0xff]
        %v438 = vld [vmem:[%s288 + $0x1c8] sm:$0xff]
        %v439 = vld [vmem:[%s288 + $0x1d0] sm:$0xff]
        %v440 = vld [vmem:[%s288 + $0x1d8] sm:$0xff]
        %v441 = vld [vmem:[%s288 + $0x1e0] sm:$0xff]
        %v442 = vld [vmem:[%s288 + $0x1e8] sm:$0xff]
        %v443 = vld [vmem:[%s288 + $0x1f0] sm:$0xff]
        %v444 = vld [vmem:[%s288 + $0x1f8] sm:$0xff]
        %v445 = vld [vmem:[%s288 + $0x200] sm:$0xff]
        %v446 = vld [vmem:[%s288 + $0x208] sm:$0xff]
        %v447 = vld [vmem:[%s288 + $0x210] sm:$0xff]
        %v448 = vld [vmem:[%s288 + $0x218] sm:$0xff]
        %v449 = vld [vmem:[%s288 + $0x220] sm:$0xff]
        %v450 = vld [vmem:[%s288 + $0x228] sm:$0xff]
        %v451 = vld [vmem:[%s288 + $0x230] sm:$0xff]
        %v452 = vld [vmem:[%s288 + $0x238] sm:$0xff]
        %v453 = vld [vmem:[%s288 + $0x240] sm:$0xff]
        %v454 = vld [vmem:[%s288 + $0x248] sm:$0xff]
        %v455 = vld [vmem:[%s288 + $0x250] sm:$0xff]
        %v456 = vld [vmem:[%s288 + $0x258] sm:$0xff]
        %v457 = vld [vmem:[%s288 + $0x260] sm:$0xff]
        %v458 = vld [vmem:[%s288 + $0x268] sm:$0xff]
        %v459 = vld [vmem:[%s288 + $0x270] sm:$0xff]
        %v460 = vld [vmem:[%s288 + $0x278] sm:$0xff]
        %v461 = vld [vmem:[%s288 + $0x280] sm:$0xff]
        %v462 = vld [vmem:[%s288 + $0x288] sm:$0xff]
        %v463 = vld [vmem:[%s288 + $0x290] sm:$0xff]
        %v464 = vld [vmem:[%s288 + $0x298] sm:$0xff]
        %v465 = vld [vmem:[%s288 + $0x2a0] sm:$0xff]
        %v466 = vld [vmem:[%s288 + $0x2a8] sm:$0xff]
        %v467 = vld [vmem:[%s288 + $0x2b0] sm:$0xff]
        %v468 = vld [vmem:[%s288 + $0x2b8] sm:$0xff]
        %v469 = vld [vmem:[%s288 + $0x2c0] sm:$0xff]
        %v470 = vld [vmem:[%s288 + $0x2c8] sm:$0xff]
        %v471 = vld [vmem:[%s288 + $0x2d0] sm:$0xff]
        %v472 = vld [vmem:[%s288 + $0x2d8] sm:$0xff]
        %v473 = vld [vmem:[%s288 + $0x2e0] sm:$0xff]
        %v474 = vld [vmem:[%s288 + $0x2e8] sm:$0xff]
        %v475 = vld [vmem:[%s288 + $0x2f0] sm:$0xff]
        %v476 = vld [vmem:[%s288 + $0x2f8] sm:$0xff]
        %v477 = vld [vmem:[%s288 + $0x300] sm:$0xff]
        %v478 = vld [vmem:[%s288 + $0x308] sm:$0xff]
        %v479 = vld [vmem:[%s288 + $0x310] sm:$0xff]
        %v480 = vld [vmem:[%s288 + $0x318] sm:$0xff]
        %v481 = vld [vmem:[%s288 + $0x320] sm:$0xff]
        %v482 = vld [vmem:[%s288 + $0x328] sm:$0xff]
        %v483 = vld [vmem:[%s288 + $0x330] sm:$0xff]
        %v484 = vld [vmem:[%s288 + $0x338] sm:$0xff]
        %v485 = vld [vmem:[%s288 + $0x340] sm:$0xff]
        %v486 = vld [vmem:[%s288 + $0x348] sm:$0xff]
        %v487 = vld [vmem:[%s288 + $0x350] sm:$0xff]
        %v488 = vld [vmem:[%s288 + $0x358] sm:$0xff]
        %v489 = vld [vmem:[%s288 + $0x360] sm:$0xff]
        %v490 = vld [vmem:[%s288 + $0x368] sm:$0xff]
        %v491 = vld [vmem:[%s288 + $0x370] sm:$0xff]
        %v492 = vld [vmem:[%s288 + $0x378] sm:$0xff]
        %v493 = vld [vmem:[%s288 + $0x380] sm:$0xff]
        %v494 = vld [vmem:[%s288 + $0x388] sm:$0xff]
        %v495 = vld [vmem:[%s288 + $0x390] sm:$0xff]
        %v496 = vld [vmem:[%s288 + $0x398] sm:$0xff]
        %v497 = vld [vmem:[%s288 + $0x3a0] sm:$0xff]
        %v498 = vld [vmem:[%s288 + $0x3a8] sm:$0xff]
        %v499 = vld [vmem:[%s288 + $0x3b0] sm:$0xff]
        %v500 = vld [vmem:[%s288 + $0x3b8] sm:$0xff]
        %v501 = vld [vmem:[%s288 + $0x3c0] sm:$0xff]
        %v502 = vld [vmem:[%s288 + $0x3c8] sm:$0xff]
        %v503 = vld [vmem:[%s288 + $0x3d0] sm:$0xff]
        %v504 = vld [vmem:[%s288 + $0x3d8] sm:$0xff]
        %v505 = vld [vmem:[%s288 + $0x3e0] sm:$0xff]
        %v506 = vld [vmem:[%s288 + $0x3e8] sm:$0xff]
        %v507 = vld [vmem:[%s288 + $0x3f0] sm:$0xff]
        %v508 = vld [vmem:[%s288 + $0x3f8] sm:$0xff]
        %v509 = vld [vmem:[%s288 + $0x400] sm:$0xff]
        %v510 = vld [vmem:[%s288 + $0x408] sm:$0xff]
        %v511 = vld [vmem:[%s288 + $0x410] sm:$0xff]
        %v512 = vld [vmem:[%s288 + $0x418] sm:$0xff]
        %v513 = vld [vmem:[%s288 + $0x420] sm:$0xff]
        %v514 = vld [vmem:[%s288 + $0x428] sm:$0xff]
        %v515 = vld [vmem:[%s288 + $0x430] sm:$0xff]
        %v516 = vld [vmem:[%s288 + $0x438] sm:$0xff]
        %v517 = vld [vmem:[%s288 + $0x440] sm:$0xff]
        %v518 = vld [vmem:[%s288 + $0x448] sm:$0xff]
        %v519 = vld [vmem:[%s288 + $0x450] sm:$0xff]
        %v520 = vld [vmem:[%s288 + $0x458] sm:$0xff]
        %v521 = vld [vmem:[%s288 + $0x460] sm:$0xff]
        %v522 = vld [vmem:[%s288 + $0x468] sm:$0xff]
        %v523 = vld [vmem:[%s288 + $0x470] sm:$0xff]
        %v524 = vld [vmem:[%s288 + $0x478] sm:$0xff]
        %v525 = vld [vmem:[%s288 + $0x480] sm:$0xff]
        %v526 = vld [vmem:[%s288 + $0x488] sm:$0xff]
        %v527 = vld [vmem:[%s288 + $0x490] sm:$0xff]
        %v528 = vld [vmem:[%s288 + $0x498] sm:$0xff]
        %v529 = vld [vmem:[%s288 + $0x4a0] sm:$0xff]
        %v530 = vld [vmem:[%s288 + $0x4a8] sm:$0xff]
        %v531 = vld [vmem:[%s288 + $0x4b0] sm:$0xff]
        %v532 = vld [vmem:[%s288 + $0x4b8] sm:$0xff]
        %v533 = vld [vmem:[%s288 + $0x4c0] sm:$0xff]
        %v534 = vld [vmem:[%s288 + $0x4c8] sm:$0xff]
        %v535 = vld [vmem:[%s288 + $0x4d0] sm:$0xff]
        %v536 = vld [vmem:[%s288 + $0x4d8] sm:$0xff]
        %v537 = vld [vmem:[%s288 + $0x4e0] sm:$0xff]
        %v538 = vld [vmem:[%s288 + $0x4e8] sm:$0xff]
        %v539 = vld [vmem:[%s288 + $0x4f0] sm:$0xff]
        %v540 = vld [vmem:[%s288 + $0x4f8] sm:$0xff]
        %v541 = vld [vmem:[%s288 + $0x500] sm:$0xff]
        %v542 = vld [vmem:[%s288 + $0x508] sm:$0xff]
        %v543 = vld [vmem:[%s288 + $0x510] sm:$0xff]
        %v544 = vld [vmem:[%s288 + $0x518] sm:$0xff]
        %v545 = vld [vmem:[%s288 + $0x520] sm:$0xff]
        %v546 = vld [vmem:[%s288 + $0x528] sm:$0xff]
        %v547 = vld [vmem:[%s288 + $0x530] sm:$0xff]
        %v548 = vld [vmem:[%s288 + $0x538] sm:$0xff]
        %v549 = vld [vmem:[%s288 + $0x540] sm:$0xff]
        %v550 = vld [vmem:[%s288 + $0x548] sm:$0xff]
        %v551 = vld [vmem:[%s288 + $0x550] sm:$0xff]
        %v552 = vld [vmem:[%s288 + $0x558] sm:$0xff]
        %v553 = vld [vmem:[%s288 + $0x560] sm:$0xff]
        %v554 = vld [vmem:[%s288 + $0x568] sm:$0xff]
        %v555 = vld [vmem:[%s288 + $0x570] sm:$0xff]
        %v556 = vld [vmem:[%s288 + $0x578] sm:$0xff]
        %v557 = vld [vmem:[%s288 + $0x580] sm:$0xff]
        %v558 = vld [vmem:[%s288 + $0x588] sm:$0xff]
        %v559 = vld [vmem:[%s288 + $0x590] sm:$0xff]
        %v560 = vld [vmem:[%s288 + $0x598] sm:$0xff]
        %v561 = vld [vmem:[%s288 + $0x5a0] sm:$0xff]
        %v562 = vld [vmem:[%s288 + $0x5a8] sm:$0xff]
        %v563 = vld [vmem:[%s288 + $0x5b0] sm:$0xff]
        %v564 = vld [vmem:[%s288 + $0x5b8] sm:$0xff]
        %v565 = vld [vmem:[%s288 + $0x5c0] sm:$0xff]
        %v566 = vld [vmem:[%s288 + $0x5c8] sm:$0xff]
        %v567 = vld [vmem:[%s288 + $0x5d0] sm:$0xff]
        %v568 = vld [vmem:[%s288 + $0x5d8] sm:$0xff]
        %v569 = vld [vmem:[%s288 + $0x5e0] sm:$0xff]
        %v570 = vld [vmem:[%s288 + $0x5e8] sm:$0xff]
        %v571 = vld [vmem:[%s288 + $0x5f0] sm:$0xff]
        %v572 = vld [vmem:[%s288 + $0x5f8] sm:$0xff]
        %v573 = vld [vmem:[%s288 + $0x600] sm:$0xff]
        %v574 = vld [vmem:[%s288 + $0x608] sm:$0xff]
        %v575 = vld [vmem:[%s288 + $0x610] sm:$0xff]
        %v576 = vld [vmem:[%s288 + $0x618] sm:$0xff]
        %v577 = vld [vmem:[%s288 + $0x620] sm:$0xff]
        %v578 = vld [vmem:[%s288 + $0x628] sm:$0xff]
        %v579 = vld [vmem:[%s288 + $0x630] sm:$0xff]
        %v580 = vld [vmem:[%s288 + $0x638] sm:$0xff]
        %v581 = vld [vmem:[%s288 + $0x640] sm:$0xff]
        %v582 = vld [vmem:[%s288 + $0x648] sm:$0xff]
        %v583 = vld [vmem:[%s288 + $0x650] sm:$0xff]
        %v584 = vld [vmem:[%s288 + $0x658] sm:$0xff]
        %v585 = vld [vmem:[%s288 + $0x660] sm:$0xff]
        %v586 = vld [vmem:[%s288 + $0x668] sm:$0xff]
        %v587 = vld [vmem:[%s288 + $0x670] sm:$0xff]
        %v588 = vld [vmem:[%s288 + $0x678] sm:$0xff]
        %v589 = vld [vmem:[%s288 + $0x680] sm:$0xff]
        %v590 = vld [vmem:[%s288 + $0x688] sm:$0xff]
        %v591 = vld [vmem:[%s288 + $0x690] sm:$0xff]
        %v592 = vld [vmem:[%s288 + $0x698] sm:$0xff]
        %v593 = vld [vmem:[%s288 + $0x6a0] sm:$0xff]
        %v594 = vld [vmem:[%s288 + $0x6a8] sm:$0xff]
        %v595 = vld [vmem:[%s288 + $0x6b0] sm:$0xff]
        %v596 = vld [vmem:[%s288 + $0x6b8] sm:$0xff]
        %v597 = vld [vmem:[%s288 + $0x6c0] sm:$0xff]
        %v598 = vld [vmem:[%s288 + $0x6c8] sm:$0xff]
        %v599 = vld [vmem:[%s288 + $0x6d0] sm:$0xff]
        %v600 = vld [vmem:[%s288 + $0x6d8] sm:$0xff]
        %v601 = vld [vmem:[%s288 + $0x6e0] sm:$0xff]
        %v602 = vld [vmem:[%s288 + $0x6e8] sm:$0xff]
        %v603 = vld [vmem:[%s288 + $0x6f0] sm:$0xff]
        %v604 = vld [vmem:[%s288 + $0x6f8] sm:$0xff]
        %v605 = vld [vmem:[%s288 + $0x700] sm:$0xff]
        %v606 = vld [vmem:[%s288 + $0x708] sm:$0xff]
        %v607 = vld [vmem:[%s288 + $0x710] sm:$0xff]
        %v608 = vld [vmem:[%s288 + $0x718] sm:$0xff]
        %v609 = vld [vmem:[%s288 + $0x720] sm:$0xff]
        %v610 = vld [vmem:[%s288 + $0x728] sm:$0xff]
        %v611 = vld [vmem:[%s288 + $0x730] sm:$0xff]
        %v612 = vld [vmem:[%s288 + $0x738] sm:$0xff]
        %v613 = vld [vmem:[%s288 + $0x740] sm:$0xff]
        %v614 = vld [vmem:[%s288 + $0x748] sm:$0xff]
        %v615 = vld [vmem:[%s288 + $0x750] sm:$0xff]
        %v616 = vld [vmem:[%s288 + $0x758] sm:$0xff]
        %v617 = vld [vmem:[%s288 + $0x760] sm:$0xff]
        %v618 = vld [vmem:[%s288 + $0x768] sm:$0xff]
        %v619 = vld [vmem:[%s288 + $0x770] sm:$0xff]
        %v620 = vld [vmem:[%s288 + $0x778] sm:$0xff]
        %v621 = vld [vmem:[%s288 + $0x780] sm:$0xff]
        %v622 = vld [vmem:[%s288 + $0x788] sm:$0xff]
        %v623 = vld [vmem:[%s288 + $0x790] sm:$0xff]
        %v624 = vld [vmem:[%s288 + $0x798] sm:$0xff]
        %v625 = vld [vmem:[%s288 + $0x7a0] sm:$0xff]
        %v626 = vld [vmem:[%s288 + $0x7a8] sm:$0xff]
        %v627 = vld [vmem:[%s288 + $0x7b0] sm:$0xff]
        %v628 = vld [vmem:[%s288 + $0x7b8] sm:$0xff]
        %v629 = vld [vmem:[%s288 + $0x7c0] sm:$0xff]
        %v630 = vld [vmem:[%s288 + $0x7c8] sm:$0xff]
        %v631 = vld [vmem:[%s288 + $0x7d0] sm:$0xff]
        %v632 = vld [vmem:[%s288 + $0x7d8] sm:$0xff]
        %v633 = vld [vmem:[%s288 + $0x7e0] sm:$0xff]
        %v634 = vld [vmem:[%s288 + $0x7e8] sm:$0xff]
        %v635 = vld [vmem:[%s288 + $0x7f0] sm:$0xff]
        %v636 = vld [vmem:[%s288 + $0x7f8] sm:$0xff]
        %v653 = vunpack.c.l.b16 %v365
        %v654 = vunpack.c.h.b16 %v365
        %v655 = vunpack.c.l.b16 %v366
        %v656 = vunpack.c.h.b16 %v366
        %v657 = vunpack.c.l.b16 %v367
        %v658 = vunpack.c.h.b16 %v367
        %v659 = vunpack.c.l.b16 %v368
        %v660 = vunpack.c.h.b16 %v368
        %v661 = vunpack.c.l.b16 %v369
        %v662 = vunpack.c.h.b16 %v369
        %v663 = vunpack.c.l.b16 %v370
        %v664 = vunpack.c.h.b16 %v370
        %v665 = vunpack.c.l.b16 %v371
        %v666 = vunpack.c.h.b16 %v371
        %v667 = vunpack.c.l.b16 %v372
        %v668 = vunpack.c.h.b16 %v372
        %v669 = vunpack.c.l.b16 %v373
        %v670 = vunpack.c.h.b16 %v373
        %v671 = vunpack.c.l.b16 %v374
        %v672 = vunpack.c.h.b16 %v374
        %v673 = vunpack.c.l.b16 %v375
        %v674 = vunpack.c.h.b16 %v375
        %v675 = vunpack.c.l.b16 %v376
        %v676 = vunpack.c.h.b16 %v376
        %v677 = vunpack.c.l.b16 %v377
        %v678 = vunpack.c.h.b16 %v377
        %v679 = vunpack.c.l.b16 %v378
        %v680 = vunpack.c.h.b16 %v378
        %v681 = vunpack.c.l.b16 %v379
        %v682 = vunpack.c.h.b16 %v379
        %v683 = vunpack.c.l.b16 %v380
        %v684 = vunpack.c.h.b16 %v380
        %v685 = vpack.c.b16 %v661, %v653
        %v686 = vpack.c.b16 %v662, %v654
        %v687 = vpack.c.b16 %v663, %v655
        %v688 = vpack.c.b16 %v664, %v656
        %v689 = vpack.c.b16 %v665, %v657
        %v690 = vpack.c.b16 %v666, %v658
        %v691 = vpack.c.b16 %v667, %v659
        %v692 = vpack.c.b16 %v668, %v660
        %v693 = vpack.c.b16 %v677, %v669
        %v694 = vpack.c.b16 %v678, %v670
        %v695 = vpack.c.b16 %v679, %v671
        %v696 = vpack.c.b16 %v680, %v672
        %v697 = vpack.c.b16 %v681, %v673
        %v698 = vpack.c.b16 %v682, %v674
        %v699 = vpack.c.b16 %v683, %v675
        %v700 = vpack.c.b16 %v684, %v676
        %v973 = vunpack.c.l.b16 %v381
        %v974 = vunpack.c.h.b16 %v381
        %v975 = vunpack.c.l.b16 %v382
        %v976 = vunpack.c.h.b16 %v382
        %v977 = vunpack.c.l.b16 %v383
        %v978 = vunpack.c.h.b16 %v383
        %v979 = vunpack.c.l.b16 %v384
        %v980 = vunpack.c.h.b16 %v384
        %v981 = vunpack.c.l.b16 %v385
        %v982 = vunpack.c.h.b16 %v385
        %v983 = vunpack.c.l.b16 %v386
        %v984 = vunpack.c.h.b16 %v386
        %v985 = vunpack.c.l.b16 %v387
        %v986 = vunpack.c.h.b16 %v387
        %v987 = vunpack.c.l.b16 %v388
        %v988 = vunpack.c.h.b16 %v388
        %v989 = vunpack.c.l.b16 %v389
        %v990 = vunpack.c.h.b16 %v389
        %v991 = vunpack.c.l.b16 %v390
        %v992 = vunpack.c.h.b16 %v390
        %v993 = vunpack.c.l.b16 %v391
        %v994 = vunpack.c.h.b16 %v391
        %v995 = vunpack.c.l.b16 %v392
        %v996 = vunpack.c.h.b16 %v392
        %v997 = vunpack.c.l.b16 %v393
        %v998 = vunpack.c.h.b16 %v393
        %v999 = vunpack.c.l.b16 %v394
        %v1000 = vunpack.c.h.b16 %v394
        %v1001 = vunpack.c.l.b16 %v395
        %v1002 = vunpack.c.h.b16 %v395
        %v1003 = vunpack.c.l.b16 %v396
        %v1004 = vunpack.c.h.b16 %v396
        %v1005 = vunpack.c.l.b16 %v397
        %v1006 = vunpack.c.h.b16 %v397
        %v1007 = vunpack.c.l.b16 %v398
        %v1008 = vunpack.c.h.b16 %v398
        %v1009 = vunpack.c.l.b16 %v399
        %v1010 = vunpack.c.h.b16 %v399
        %v1011 = vunpack.c.l.b16 %v400
        %v1012 = vunpack.c.h.b16 %v400
        %v1013 = vunpack.c.l.b16 %v401
        %v1014 = vunpack.c.h.b16 %v401
        %v1015 = vunpack.c.l.b16 %v402
        %v1016 = vunpack.c.h.b16 %v402
        %v1017 = vunpack.c.l.b16 %v403
        %v1018 = vunpack.c.h.b16 %v403
        %v1019 = vunpack.c.l.b16 %v404
        %v1020 = vunpack.c.h.b16 %v404
        %v1021 = vunpack.c.l.b16 %v405
        %v1022 = vunpack.c.h.b16 %v405
        %v1023 = vunpack.c.l.b16 %v406
        %v1024 = vunpack.c.h.b16 %v406
        %v1025 = vunpack.c.l.b16 %v407
        %v1026 = vunpack.c.h.b16 %v407
        %v1027 = vunpack.c.l.b16 %v408
        %v1028 = vunpack.c.h.b16 %v408
        %v1029 = vunpack.c.l.b16 %v409
        %v1030 = vunpack.c.h.b16 %v409
        %v1031 = vunpack.c.l.b16 %v410
        %v1032 = vunpack.c.h.b16 %v410
        %v1033 = vunpack.c.l.b16 %v411
        %v1034 = vunpack.c.h.b16 %v411
        %v1035 = vunpack.c.l.b16 %v412
        %v1036 = vunpack.c.h.b16 %v412
        %v1037 = vunpack.c.l.b16 %v413
        %v1038 = vunpack.c.h.b16 %v413
        %v1039 = vunpack.c.l.b16 %v414
        %v1040 = vunpack.c.h.b16 %v414
        %v1041 = vunpack.c.l.b16 %v415
        %v1042 = vunpack.c.h.b16 %v415
        %v1043 = vunpack.c.l.b16 %v416
        %v1044 = vunpack.c.h.b16 %v416
        %v1045 = vunpack.c.l.b16 %v417
        %v1046 = vunpack.c.h.b16 %v417
        %v1047 = vunpack.c.l.b16 %v418
        %v1048 = vunpack.c.h.b16 %v418
        %v1049 = vunpack.c.l.b16 %v419
        %v1050 = vunpack.c.h.b16 %v419
        %v1051 = vunpack.c.l.b16 %v420
        %v1052 = vunpack.c.h.b16 %v420
        %v1053 = vunpack.c.l.b16 %v421
        %v1054 = vunpack.c.h.b16 %v421
        %v1055 = vunpack.c.l.b16 %v422
        %v1056 = vunpack.c.h.b16 %v422
        %v1057 = vunpack.c.l.b16 %v423
        %v1058 = vunpack.c.h.b16 %v423
        %v1059 = vunpack.c.l.b16 %v424
        %v1060 = vunpack.c.h.b16 %v424
        %v1061 = vunpack.c.l.b16 %v425
        %v1062 = vunpack.c.h.b16 %v425
        %v1063 = vunpack.c.l.b16 %v426
        %v1064 = vunpack.c.h.b16 %v426
        %v1065 = vunpack.c.l.b16 %v427
        %v1066 = vunpack.c.h.b16 %v427
        %v1067 = vunpack.c.l.b16 %v428
        %v1068 = vunpack.c.h.b16 %v428
        %v1069 = vunpack.c.l.b16 %v429
        %v1070 = vunpack.c.h.b16 %v429
        %v1071 = vunpack.c.l.b16 %v430
        %v1072 = vunpack.c.h.b16 %v430
        %v1073 = vunpack.c.l.b16 %v431
        %v1074 = vunpack.c.h.b16 %v431
        %v1075 = vunpack.c.l.b16 %v432
        %v1076 = vunpack.c.h.b16 %v432
        %v1077 = vunpack.c.l.b16 %v433
        %v1078 = vunpack.c.h.b16 %v433
        %v1079 = vunpack.c.l.b16 %v434
        %v1080 = vunpack.c.h.b16 %v434
        %v1081 = vunpack.c.l.b16 %v435
        %v1082 = vunpack.c.h.b16 %v435
        %v1083 = vunpack.c.l.b16 %v436
        %v1084 = vunpack.c.h.b16 %v436
        %v1085 = vunpack.c.l.b16 %v437
        %v1086 = vunpack.c.h.b16 %v437
        %v1087 = vunpack.c.l.b16 %v438
        %v1088 = vunpack.c.h.b16 %v438
        %v1089 = vunpack.c.l.b16 %v439
        %v1090 = vunpack.c.h.b16 %v439
        %v1091 = vunpack.c.l.b16 %v440
        %v1092 = vunpack.c.h.b16 %v440
        %v1093 = vunpack.c.l.b16 %v441
        %v1094 = vunpack.c.h.b16 %v441
        %v1095 = vunpack.c.l.b16 %v442
        %v1096 = vunpack.c.h.b16 %v442
        %v1097 = vunpack.c.l.b16 %v443
        %v1098 = vunpack.c.h.b16 %v443
        %v1099 = vunpack.c.l.b16 %v444
        %v1100 = vunpack.c.h.b16 %v444
        %v1101 = vunpack.c.l.b16 %v445
        %v1102 = vunpack.c.h.b16 %v445
        %v1103 = vunpack.c.l.b16 %v446
        %v1104 = vunpack.c.h.b16 %v446
        %v1105 = vunpack.c.l.b16 %v447
        %v1106 = vunpack.c.h.b16 %v447
        %v1107 = vunpack.c.l.b16 %v448
        %v1108 = vunpack.c.h.b16 %v448
        %v1109 = vunpack.c.l.b16 %v449
        %v1110 = vunpack.c.h.b16 %v449
        %v1111 = vunpack.c.l.b16 %v450
        %v1112 = vunpack.c.h.b16 %v450
        %v1113 = vunpack.c.l.b16 %v451
        %v1114 = vunpack.c.h.b16 %v451
        %v1115 = vunpack.c.l.b16 %v452
        %v1116 = vunpack.c.h.b16 %v452
        %v1117 = vunpack.c.l.b16 %v453
        %v1118 = vunpack.c.h.b16 %v453
        %v1119 = vunpack.c.l.b16 %v454
        %v1120 = vunpack.c.h.b16 %v454
        %v1121 = vunpack.c.l.b16 %v455
        %v1122 = vunpack.c.h.b16 %v455
        %v1123 = vunpack.c.l.b16 %v456
        %v1124 = vunpack.c.h.b16 %v456
        %v1125 = vunpack.c.l.b16 %v457
        %v1126 = vunpack.c.h.b16 %v457
        %v1127 = vunpack.c.l.b16 %v458
        %v1128 = vunpack.c.h.b16 %v458
        %v1129 = vunpack.c.l.b16 %v459
        %v1130 = vunpack.c.h.b16 %v459
        %v1131 = vunpack.c.l.b16 %v460
        %v1132 = vunpack.c.h.b16 %v460
        %v1133 = vunpack.c.l.b16 %v461
        %v1134 = vunpack.c.h.b16 %v461
        %v1135 = vunpack.c.l.b16 %v462
        %v1136 = vunpack.c.h.b16 %v462
        %v1137 = vunpack.c.l.b16 %v463
        %v1138 = vunpack.c.h.b16 %v463
        %v1139 = vunpack.c.l.b16 %v464
        %v1140 = vunpack.c.h.b16 %v464
        %v1141 = vunpack.c.l.b16 %v465
        %v1142 = vunpack.c.h.b16 %v465
        %v1143 = vunpack.c.l.b16 %v466
        %v1144 = vunpack.c.h.b16 %v466
        %v1145 = vunpack.c.l.b16 %v467
        %v1146 = vunpack.c.h.b16 %v467
        %v1147 = vunpack.c.l.b16 %v468
        %v1148 = vunpack.c.h.b16 %v468
        %v1149 = vunpack.c.l.b16 %v469
        %v1150 = vunpack.c.h.b16 %v469
        %v1151 = vunpack.c.l.b16 %v470
        %v1152 = vunpack.c.h.b16 %v470
        %v1153 = vunpack.c.l.b16 %v471
        %v1154 = vunpack.c.h.b16 %v471
        %v1155 = vunpack.c.l.b16 %v472
        %v1156 = vunpack.c.h.b16 %v472
        %v1157 = vunpack.c.l.b16 %v473
        %v1158 = vunpack.c.h.b16 %v473
        %v1159 = vunpack.c.l.b16 %v474
        %v1160 = vunpack.c.h.b16 %v474
        %v1161 = vunpack.c.l.b16 %v475
        %v1162 = vunpack.c.h.b16 %v475
        %v1163 = vunpack.c.l.b16 %v476
        %v1164 = vunpack.c.h.b16 %v476
        %v1165 = vunpack.c.l.b16 %v477
        %v1166 = vunpack.c.h.b16 %v477
        %v1167 = vunpack.c.l.b16 %v478
        %v1168 = vunpack.c.h.b16 %v478
        %v1169 = vunpack.c.l.b16 %v479
        %v1170 = vunpack.c.h.b16 %v479
        %v1171 = vunpack.c.l.b16 %v480
        %v1172 = vunpack.c.h.b16 %v480
        %v1173 = vunpack.c.l.b16 %v481
        %v1174 = vunpack.c.h.b16 %v481
        %v1175 = vunpack.c.l.b16 %v482
        %v1176 = vunpack.c.h.b16 %v482
        %v1177 = vunpack.c.l.b16 %v483
        %v1178 = vunpack.c.h.b16 %v483
        %v1179 = vunpack.c.l.b16 %v484
        %v1180 = vunpack.c.h.b16 %v484
        %v1181 = vunpack.c.l.b16 %v485
        %v1182 = vunpack.c.h.b16 %v485
        %v1183 = vunpack.c.l.b16 %v486
        %v1184 = vunpack.c.h.b16 %v486
        %v1185 = vunpack.c.l.b16 %v487
        %v1186 = vunpack.c.h.b16 %v487
        %v1187 = vunpack.c.l.b16 %v488
        %v1188 = vunpack.c.h.b16 %v488
        %v1189 = vunpack.c.l.b16 %v489
        %v1190 = vunpack.c.h.b16 %v489
        %v1191 = vunpack.c.l.b16 %v490
        %v1192 = vunpack.c.h.b16 %v490
        %v1193 = vunpack.c.l.b16 %v491
        %v1194 = vunpack.c.h.b16 %v491
        %v1195 = vunpack.c.l.b16 %v492
        %v1196 = vunpack.c.h.b16 %v492
        %v1197 = vunpack.c.l.b16 %v493
        %v1198 = vunpack.c.h.b16 %v493
        %v1199 = vunpack.c.l.b16 %v494
        %v1200 = vunpack.c.h.b16 %v494
        %v1201 = vunpack.c.l.b16 %v495
        %v1202 = vunpack.c.h.b16 %v495
        %v1203 = vunpack.c.l.b16 %v496
        %v1204 = vunpack.c.h.b16 %v496
        %v1205 = vunpack.c.l.b16 %v497
        %v1206 = vunpack.c.h.b16 %v497
        %v1207 = vunpack.c.l.b16 %v498
        %v1208 = vunpack.c.h.b16 %v498
        %v1209 = vunpack.c.l.b16 %v499
        %v1210 = vunpack.c.h.b16 %v499
        %v1211 = vunpack.c.l.b16 %v500
        %v1212 = vunpack.c.h.b16 %v500
        %v1213 = vunpack.c.l.b16 %v501
        %v1214 = vunpack.c.h.b16 %v501
        %v1215 = vunpack.c.l.b16 %v502
        %v1216 = vunpack.c.h.b16 %v502
        %v1217 = vunpack.c.l.b16 %v503
        %v1218 = vunpack.c.h.b16 %v503
        %v1219 = vunpack.c.l.b16 %v504
        %v1220 = vunpack.c.h.b16 %v504
        %v1221 = vunpack.c.l.b16 %v505
        %v1222 = vunpack.c.h.b16 %v505
        %v1223 = vunpack.c.l.b16 %v506
        %v1224 = vunpack.c.h.b16 %v506
        %v1225 = vunpack.c.l.b16 %v507
        %v1226 = vunpack.c.h.b16 %v507
        %v1227 = vunpack.c.l.b16 %v508
        %v1228 = vunpack.c.h.b16 %v508
        %v1229 = vunpack.c.l.b16 %v509
        %v1230 = vunpack.c.h.b16 %v509
        %v1231 = vunpack.c.l.b16 %v510
        %v1232 = vunpack.c.h.b16 %v510
        %v1233 = vunpack.c.l.b16 %v511
        %v1234 = vunpack.c.h.b16 %v511
        %v1235 = vunpack.c.l.b16 %v512
        %v1236 = vunpack.c.h.b16 %v512
        %v1237 = vunpack.c.l.b16 %v513
        %v1238 = vunpack.c.h.b16 %v513
        %v1239 = vunpack.c.l.b16 %v514
        %v1240 = vunpack.c.h.b16 %v514
        %v1241 = vunpack.c.l.b16 %v515
        %v1242 = vunpack.c.h.b16 %v515
        %v1243 = vunpack.c.l.b16 %v516
        %v1244 = vunpack.c.h.b16 %v516
        %v1245 = vunpack.c.l.b16 %v517
        %v1246 = vunpack.c.h.b16 %v517
        %v1247 = vunpack.c.l.b16 %v518
        %v1248 = vunpack.c.h.b16 %v518
        %v1249 = vunpack.c.l.b16 %v519
        %v1250 = vunpack.c.h.b16 %v519
        %v1251 = vunpack.c.l.b16 %v520
        %v1252 = vunpack.c.h.b16 %v520
        %v1253 = vunpack.c.l.b16 %v521
        %v1254 = vunpack.c.h.b16 %v521
        %v1255 = vunpack.c.l.b16 %v522
        %v1256 = vunpack.c.h.b16 %v522
        %v1257 = vunpack.c.l.b16 %v523
        %v1258 = vunpack.c.h.b16 %v523
        %v1259 = vunpack.c.l.b16 %v524
        %v1260 = vunpack.c.h.b16 %v524
        %v1261 = vunpack.c.l.b16 %v525
        %v1262 = vunpack.c.h.b16 %v525
        %v1263 = vunpack.c.l.b16 %v526
        %v1264 = vunpack.c.h.b16 %v526
        %v1265 = vunpack.c.l.b16 %v527
        %v1266 = vunpack.c.h.b16 %v527
        %v1267 = vunpack.c.l.b16 %v528
        %v1268 = vunpack.c.h.b16 %v528
        %v1269 = vunpack.c.l.b16 %v529
        %v1270 = vunpack.c.h.b16 %v529
        %v1271 = vunpack.c.l.b16 %v530
        %v1272 = vunpack.c.h.b16 %v530
        %v1273 = vunpack.c.l.b16 %v531
        %v1274 = vunpack.c.h.b16 %v531
        %v1275 = vunpack.c.l.b16 %v532
        %v1276 = vunpack.c.h.b16 %v532
        %v1277 = vunpack.c.l.b16 %v533
        %v1278 = vunpack.c.h.b16 %v533
        %v1279 = vunpack.c.l.b16 %v534
        %v1280 = vunpack.c.h.b16 %v534
        %v1281 = vunpack.c.l.b16 %v535
        %v1282 = vunpack.c.h.b16 %v535
        %v1283 = vunpack.c.l.b16 %v536
        %v1284 = vunpack.c.h.b16 %v536
        %v1285 = vunpack.c.l.b16 %v537
        %v1286 = vunpack.c.h.b16 %v537
        %v1287 = vunpack.c.l.b16 %v538
        %v1288 = vunpack.c.h.b16 %v538
        %v1289 = vunpack.c.l.b16 %v539
        %v1290 = vunpack.c.h.b16 %v539
        %v1291 = vunpack.c.l.b16 %v540
        %v1292 = vunpack.c.h.b16 %v540
        %v1293 = vunpack.c.l.b16 %v541
        %v1294 = vunpack.c.h.b16 %v541
        %v1295 = vunpack.c.l.b16 %v542
        %v1296 = vunpack.c.h.b16 %v542
        %v1297 = vunpack.c.l.b16 %v543
        %v1298 = vunpack.c.h.b16 %v543
        %v1299 = vunpack.c.l.b16 %v544
        %v1300 = vunpack.c.h.b16 %v544
        %v1301 = vunpack.c.l.b16 %v545
        %v1302 = vunpack.c.h.b16 %v545
        %v1303 = vunpack.c.l.b16 %v546
        %v1304 = vunpack.c.h.b16 %v546
        %v1305 = vunpack.c.l.b16 %v547
        %v1306 = vunpack.c.h.b16 %v547
        %v1307 = vunpack.c.l.b16 %v548
        %v1308 = vunpack.c.h.b16 %v548
        %v1309 = vunpack.c.l.b16 %v549
        %v1310 = vunpack.c.h.b16 %v549
        %v1311 = vunpack.c.l.b16 %v550
        %v1312 = vunpack.c.h.b16 %v550
        %v1313 = vunpack.c.l.b16 %v551
        %v1314 = vunpack.c.h.b16 %v551
        %v1315 = vunpack.c.l.b16 %v552
        %v1316 = vunpack.c.h.b16 %v552
        %v1317 = vunpack.c.l.b16 %v553
        %v1318 = vunpack.c.h.b16 %v553
        %v1319 = vunpack.c.l.b16 %v554
        %v1320 = vunpack.c.h.b16 %v554
        %v1321 = vunpack.c.l.b16 %v555
        %v1322 = vunpack.c.h.b16 %v555
        %v1323 = vunpack.c.l.b16 %v556
        %v1324 = vunpack.c.h.b16 %v556
        %v1325 = vunpack.c.l.b16 %v557
        %v1326 = vunpack.c.h.b16 %v557
        %v1327 = vunpack.c.l.b16 %v558
        %v1328 = vunpack.c.h.b16 %v558
        %v1329 = vunpack.c.l.b16 %v559
        %v1330 = vunpack.c.h.b16 %v559
        %v1331 = vunpack.c.l.b16 %v560
        %v1332 = vunpack.c.h.b16 %v560
        %v1333 = vunpack.c.l.b16 %v561
        %v1334 = vunpack.c.h.b16 %v561
        %v1335 = vunpack.c.l.b16 %v562
        %v1336 = vunpack.c.h.b16 %v562
        %v1337 = vunpack.c.l.b16 %v563
        %v1338 = vunpack.c.h.b16 %v563
        %v1339 = vunpack.c.l.b16 %v564
        %v1340 = vunpack.c.h.b16 %v564
        %v1341 = vunpack.c.l.b16 %v565
        %v1342 = vunpack.c.h.b16 %v565
        %v1343 = vunpack.c.l.b16 %v566
        %v1344 = vunpack.c.h.b16 %v566
        %v1345 = vunpack.c.l.b16 %v567
        %v1346 = vunpack.c.h.b16 %v567
        %v1347 = vunpack.c.l.b16 %v568
        %v1348 = vunpack.c.h.b16 %v568
        %v1349 = vunpack.c.l.b16 %v569
        %v1350 = vunpack.c.h.b16 %v569
        %v1351 = vunpack.c.l.b16 %v570
        %v1352 = vunpack.c.h.b16 %v570
        %v1353 = vunpack.c.l.b16 %v571
        %v1354 = vunpack.c.h.b16 %v571
        %v1355 = vunpack.c.l.b16 %v572
        %v1356 = vunpack.c.h.b16 %v572
        %v1357 = vunpack.c.l.b16 %v573
        %v1358 = vunpack.c.h.b16 %v573
        %v1359 = vunpack.c.l.b16 %v574
        %v1360 = vunpack.c.h.b16 %v574
        %v1361 = vunpack.c.l.b16 %v575
        %v1362 = vunpack.c.h.b16 %v575
        %v1363 = vunpack.c.l.b16 %v576
        %v1364 = vunpack.c.h.b16 %v576
        %v1365 = vunpack.c.l.b16 %v577
        %v1366 = vunpack.c.h.b16 %v577
        %v1367 = vunpack.c.l.b16 %v578
        %v1368 = vunpack.c.h.b16 %v578
        %v1369 = vunpack.c.l.b16 %v579
        %v1370 = vunpack.c.h.b16 %v579
        %v1371 = vunpack.c.l.b16 %v580
        %v1372 = vunpack.c.h.b16 %v580
        %v1373 = vunpack.c.l.b16 %v581
        %v1374 = vunpack.c.h.b16 %v581
        %v1375 = vunpack.c.l.b16 %v582
        %v1376 = vunpack.c.h.b16 %v582
        %v1377 = vunpack.c.l.b16 %v583
        %v1378 = vunpack.c.h.b16 %v583
        %v1379 = vunpack.c.l.b16 %v584
        %v1380 = vunpack.c.h.b16 %v584
        %v1381 = vunpack.c.l.b16 %v585
        %v1382 = vunpack.c.h.b16 %v585
        %v1383 = vunpack.c.l.b16 %v586
        %v1384 = vunpack.c.h.b16 %v586
        %v1385 = vunpack.c.l.b16 %v587
        %v1386 = vunpack.c.h.b16 %v587
        %v1387 = vunpack.c.l.b16 %v588
        %v1388 = vunpack.c.h.b16 %v588
        %v1389 = vunpack.c.l.b16 %v589
        %v1390 = vunpack.c.h.b16 %v589
        %v1391 = vunpack.c.l.b16 %v590
        %v1392 = vunpack.c.h.b16 %v590
        %v1393 = vunpack.c.l.b16 %v591
        %v1394 = vunpack.c.h.b16 %v591
        %v1395 = vunpack.c.l.b16 %v592
        %v1396 = vunpack.c.h.b16 %v592
        %v1397 = vunpack.c.l.b16 %v593
        %v1398 = vunpack.c.h.b16 %v593
        %v1399 = vunpack.c.l.b16 %v594
        %v1400 = vunpack.c.h.b16 %v594
        %v1401 = vunpack.c.l.b16 %v595
        %v1402 = vunpack.c.h.b16 %v595
        %v1403 = vunpack.c.l.b16 %v596
        %v1404 = vunpack.c.h.b16 %v596
        %v1405 = vunpack.c.l.b16 %v597
        %v1406 = vunpack.c.h.b16 %v597
        %v1407 = vunpack.c.l.b16 %v598
        %v1408 = vunpack.c.h.b16 %v598
        %v1409 = vunpack.c.l.b16 %v599
        %v1410 = vunpack.c.h.b16 %v599
        %v1411 = vunpack.c.l.b16 %v600
        %v1412 = vunpack.c.h.b16 %v600
        %v1413 = vunpack.c.l.b16 %v601
        %v1414 = vunpack.c.h.b16 %v601
        %v1415 = vunpack.c.l.b16 %v602
        %v1416 = vunpack.c.h.b16 %v602
        %v1417 = vunpack.c.l.b16 %v603
        %v1418 = vunpack.c.h.b16 %v603
        %v1419 = vunpack.c.l.b16 %v604
        %v1420 = vunpack.c.h.b16 %v604
        %v1421 = vunpack.c.l.b16 %v605
        %v1422 = vunpack.c.h.b16 %v605
        %v1423 = vunpack.c.l.b16 %v606
        %v1424 = vunpack.c.h.b16 %v606
        %v1425 = vunpack.c.l.b16 %v607
        %v1426 = vunpack.c.h.b16 %v607
        %v1427 = vunpack.c.l.b16 %v608
        %v1428 = vunpack.c.h.b16 %v608
        %v1429 = vunpack.c.l.b16 %v609
        %v1430 = vunpack.c.h.b16 %v609
        %v1431 = vunpack.c.l.b16 %v610
        %v1432 = vunpack.c.h.b16 %v610
        %v1433 = vunpack.c.l.b16 %v611
        %v1434 = vunpack.c.h.b16 %v611
        %v1435 = vunpack.c.l.b16 %v612
        %v1436 = vunpack.c.h.b16 %v612
        %v1437 = vunpack.c.l.b16 %v613
        %v1438 = vunpack.c.h.b16 %v613
        %v1439 = vunpack.c.l.b16 %v614
        %v1440 = vunpack.c.h.b16 %v614
        %v1441 = vunpack.c.l.b16 %v615
        %v1442 = vunpack.c.h.b16 %v615
        %v1443 = vunpack.c.l.b16 %v616
        %v1444 = vunpack.c.h.b16 %v616
        %v1445 = vunpack.c.l.b16 %v617
        %v1446 = vunpack.c.h.b16 %v617
        %v1447 = vunpack.c.l.b16 %v618
        %v1448 = vunpack.c.h.b16 %v618
        %v1449 = vunpack.c.l.b16 %v619
        %v1450 = vunpack.c.h.b16 %v619
        %v1451 = vunpack.c.l.b16 %v620
        %v1452 = vunpack.c.h.b16 %v620
        %v1453 = vunpack.c.l.b16 %v621
        %v1454 = vunpack.c.h.b16 %v621
        %v1455 = vunpack.c.l.b16 %v622
        %v1456 = vunpack.c.h.b16 %v622
        %v1457 = vunpack.c.l.b16 %v623
        %v1458 = vunpack.c.h.b16 %v623
        %v1459 = vunpack.c.l.b16 %v624
        %v1460 = vunpack.c.h.b16 %v624
        %v1461 = vunpack.c.l.b16 %v625
        %v1462 = vunpack.c.h.b16 %v625
        %v1463 = vunpack.c.l.b16 %v626
        %v1464 = vunpack.c.h.b16 %v626
        %v1465 = vunpack.c.l.b16 %v627
        %v1466 = vunpack.c.h.b16 %v627
        %v1467 = vunpack.c.l.b16 %v628
        %v1468 = vunpack.c.h.b16 %v628
        %v1469 = vunpack.c.l.b16 %v629
        %v1470 = vunpack.c.h.b16 %v629
        %v1471 = vunpack.c.l.b16 %v630
        %v1472 = vunpack.c.h.b16 %v630
        %v1473 = vunpack.c.l.b16 %v631
        %v1474 = vunpack.c.h.b16 %v631
        %v1475 = vunpack.c.l.b16 %v632
        %v1476 = vunpack.c.h.b16 %v632
        %v1477 = vunpack.c.l.b16 %v633
        %v1478 = vunpack.c.h.b16 %v633
        %v1479 = vunpack.c.l.b16 %v634
        %v1480 = vunpack.c.h.b16 %v634
        %v1481 = vunpack.c.l.b16 %v635
        %v1482 = vunpack.c.h.b16 %v635
        %v1483 = vunpack.c.l.b16 %v636
        %v1484 = vunpack.c.h.b16 %v636
        %v1485 = vpack.c.b16 %v977, %v973
        %v1486 = vpack.c.b16 %v978, %v974
        %v1487 = vpack.c.b16 %v979, %v975
        %v1488 = vpack.c.b16 %v980, %v976
        %v1489 = vpack.c.b16 %v985, %v981
        %v1490 = vpack.c.b16 %v986, %v982
        %v1491 = vpack.c.b16 %v987, %v983
        %v1492 = vpack.c.b16 %v988, %v984
        %v1493 = vpack.c.b16 %v993, %v989
        %v1494 = vpack.c.b16 %v994, %v990
        %v1495 = vpack.c.b16 %v995, %v991
        %v1496 = vpack.c.b16 %v996, %v992
        %v1497 = vpack.c.b16 %v1001, %v997
        %v1498 = vpack.c.b16 %v1002, %v998
        %v1499 = vpack.c.b16 %v1003, %v999
        %v1500 = vpack.c.b16 %v1004, %v1000
        %v1501 = vpack.c.b16 %v1009, %v1005
        %v1502 = vpack.c.b16 %v1010, %v1006
        %v1503 = vpack.c.b16 %v1011, %v1007
        %v1504 = vpack.c.b16 %v1012, %v1008
        %v1505 = vpack.c.b16 %v1017, %v1013
        %v1506 = vpack.c.b16 %v1018, %v1014
        %v1507 = vpack.c.b16 %v1019, %v1015
        %v1508 = vpack.c.b16 %v1020, %v1016
        %v1509 = vpack.c.b16 %v1025, %v1021
        %v1510 = vpack.c.b16 %v1026, %v1022
        %v1511 = vpack.c.b16 %v1027, %v1023
        %v1512 = vpack.c.b16 %v1028, %v1024
        %v1513 = vpack.c.b16 %v1033, %v1029
        %v1514 = vpack.c.b16 %v1034, %v1030
        %v1515 = vpack.c.b16 %v1035, %v1031
        %v1516 = vpack.c.b16 %v1036, %v1032
        %v1517 = vpack.c.b16 %v1041, %v1037
        %v1518 = vpack.c.b16 %v1042, %v1038
        %v1519 = vpack.c.b16 %v1043, %v1039
        %v1520 = vpack.c.b16 %v1044, %v1040
        %v1521 = vpack.c.b16 %v1049, %v1045
        %v1522 = vpack.c.b16 %v1050, %v1046
        %v1523 = vpack.c.b16 %v1051, %v1047
        %v1524 = vpack.c.b16 %v1052, %v1048
        %v1525 = vpack.c.b16 %v1057, %v1053
        %v1526 = vpack.c.b16 %v1058, %v1054
        %v1527 = vpack.c.b16 %v1059, %v1055
        %v1528 = vpack.c.b16 %v1060, %v1056
        %v1529 = vpack.c.b16 %v1065, %v1061
        %v1530 = vpack.c.b16 %v1066, %v1062
        %v1531 = vpack.c.b16 %v1067, %v1063
        %v1532 = vpack.c.b16 %v1068, %v1064
        %v1533 = vpack.c.b16 %v1073, %v1069
        %v1534 = vpack.c.b16 %v1074, %v1070
        %v1535 = vpack.c.b16 %v1075, %v1071
        %v1536 = vpack.c.b16 %v1076, %v1072
        %v1537 = vpack.c.b16 %v1081, %v1077
        %v1538 = vpack.c.b16 %v1082, %v1078
        %v1539 = vpack.c.b16 %v1083, %v1079
        %v1540 = vpack.c.b16 %v1084, %v1080
        %v1541 = vpack.c.b16 %v1089, %v1085
        %v1542 = vpack.c.b16 %v1090, %v1086
        %v1543 = vpack.c.b16 %v1091, %v1087
        %v1544 = vpack.c.b16 %v1092, %v1088
        %v1545 = vpack.c.b16 %v1097, %v1093
        %v1546 = vpack.c.b16 %v1098, %v1094
        %v1547 = vpack.c.b16 %v1099, %v1095
        %v1548 = vpack.c.b16 %v1100, %v1096
        %v1549 = vpack.c.b16 %v1105, %v1101
        %v1550 = vpack.c.b16 %v1106, %v1102
        %v1551 = vpack.c.b16 %v1107, %v1103
        %v1552 = vpack.c.b16 %v1108, %v1104
        %v1553 = vpack.c.b16 %v1113, %v1109
        %v1554 = vpack.c.b16 %v1114, %v1110
        %v1555 = vpack.c.b16 %v1115, %v1111
        %v1556 = vpack.c.b16 %v1116, %v1112
        %v1557 = vpack.c.b16 %v1121, %v1117
        %v1558 = vpack.c.b16 %v1122, %v1118
        %v1559 = vpack.c.b16 %v1123, %v1119
        %v1560 = vpack.c.b16 %v1124, %v1120
        %v1561 = vpack.c.b16 %v1129, %v1125
        %v1562 = vpack.c.b16 %v1130, %v1126
        %v1563 = vpack.c.b16 %v1131, %v1127
        %v1564 = vpack.c.b16 %v1132, %v1128
        %v1565 = vpack.c.b16 %v1137, %v1133
        %v1566 = vpack.c.b16 %v1138, %v1134
        %v1567 = vpack.c.b16 %v1139, %v1135
        %v1568 = vpack.c.b16 %v1140, %v1136
        %v1569 = vpack.c.b16 %v1145, %v1141
        %v1570 = vpack.c.b16 %v1146, %v1142
        %v1571 = vpack.c.b16 %v1147, %v1143
        %v1572 = vpack.c.b16 %v1148, %v1144
        %v1573 = vpack.c.b16 %v1153, %v1149
        %v1574 = vpack.c.b16 %v1154, %v1150
        %v1575 = vpack.c.b16 %v1155, %v1151
        %v1576 = vpack.c.b16 %v1156, %v1152
        %v1577 = vpack.c.b16 %v1161, %v1157
        %v1578 = vpack.c.b16 %v1162, %v1158
        %v1579 = vpack.c.b16 %v1163, %v1159
        %v1580 = vpack.c.b16 %v1164, %v1160
        %v1581 = vpack.c.b16 %v1169, %v1165
        %v1582 = vpack.c.b16 %v1170, %v1166
        %v1583 = vpack.c.b16 %v1171, %v1167
        %v1584 = vpack.c.b16 %v1172, %v1168
        %v1585 = vpack.c.b16 %v1177, %v1173
        %v1586 = vpack.c.b16 %v1178, %v1174
        %v1587 = vpack.c.b16 %v1179, %v1175
        %v1588 = vpack.c.b16 %v1180, %v1176
        %v1589 = vpack.c.b16 %v1185, %v1181
        %v1590 = vpack.c.b16 %v1186, %v1182
        %v1591 = vpack.c.b16 %v1187, %v1183
        %v1592 = vpack.c.b16 %v1188, %v1184
        %v1593 = vpack.c.b16 %v1193, %v1189
        %v1594 = vpack.c.b16 %v1194, %v1190
        %v1595 = vpack.c.b16 %v1195, %v1191
        %v1596 = vpack.c.b16 %v1196, %v1192
        %v1597 = vpack.c.b16 %v1201, %v1197
        %v1598 = vpack.c.b16 %v1202, %v1198
        %v1599 = vpack.c.b16 %v1203, %v1199
        %v1600 = vpack.c.b16 %v1204, %v1200
        %v1601 = vpack.c.b16 %v1209, %v1205
        %v1602 = vpack.c.b16 %v1210, %v1206
        %v1603 = vpack.c.b16 %v1211, %v1207
        %v1604 = vpack.c.b16 %v1212, %v1208
        %v1605 = vpack.c.b16 %v1217, %v1213
        %v1606 = vpack.c.b16 %v1218, %v1214
        %v1607 = vpack.c.b16 %v1219, %v1215
        %v1608 = vpack.c.b16 %v1220, %v1216
        %v1609 = vpack.c.b16 %v1225, %v1221
        %v1610 = vpack.c.b16 %v1226, %v1222
        %v1611 = vpack.c.b16 %v1227, %v1223
        %v1612 = vpack.c.b16 %v1228, %v1224
        %v1613 = vpack.c.b16 %v1233, %v1229
        %v1614 = vpack.c.b16 %v1234, %v1230
        %v1615 = vpack.c.b16 %v1235, %v1231
        %v1616 = vpack.c.b16 %v1236, %v1232
        %v1617 = vpack.c.b16 %v1241, %v1237
        %v1618 = vpack.c.b16 %v1242, %v1238
        %v1619 = vpack.c.b16 %v1243, %v1239
        %v1620 = vpack.c.b16 %v1244, %v1240
        %v1621 = vpack.c.b16 %v1249, %v1245
        %v1622 = vpack.c.b16 %v1250, %v1246
        %v1623 = vpack.c.b16 %v1251, %v1247
        %v1624 = vpack.c.b16 %v1252, %v1248
        %v1625 = vpack.c.b16 %v1257, %v1253
        %v1626 = vpack.c.b16 %v1258, %v1254
        %v1627 = vpack.c.b16 %v1259, %v1255
        %v1628 = vpack.c.b16 %v1260, %v1256
        %v1629 = vpack.c.b16 %v1265, %v1261
        %v1630 = vpack.c.b16 %v1266, %v1262
        %v1631 = vpack.c.b16 %v1267, %v1263
        %v1632 = vpack.c.b16 %v1268, %v1264
        %v1633 = vpack.c.b16 %v1273, %v1269
        %v1634 = vpack.c.b16 %v1274, %v1270
        %v1635 = vpack.c.b16 %v1275, %v1271
        %v1636 = vpack.c.b16 %v1276, %v1272
        %v1637 = vpack.c.b16 %v1281, %v1277
        %v1638 = vpack.c.b16 %v1282, %v1278
        %v1639 = vpack.c.b16 %v1283, %v1279
        %v1640 = vpack.c.b16 %v1284, %v1280
        %v1641 = vpack.c.b16 %v1289, %v1285
        %v1642 = vpack.c.b16 %v1290, %v1286
        %v1643 = vpack.c.b16 %v1291, %v1287
        %v1644 = vpack.c.b16 %v1292, %v1288
        %v1645 = vpack.c.b16 %v1297, %v1293
        %v1646 = vpack.c.b16 %v1298, %v1294
        %v1647 = vpack.c.b16 %v1299, %v1295
        %v1648 = vpack.c.b16 %v1300, %v1296
        %v1649 = vpack.c.b16 %v1305, %v1301
        %v1650 = vpack.c.b16 %v1306, %v1302
        %v1651 = vpack.c.b16 %v1307, %v1303
        %v1652 = vpack.c.b16 %v1308, %v1304
        %v1653 = vpack.c.b16 %v1313, %v1309
        %v1654 = vpack.c.b16 %v1314, %v1310
        %v1655 = vpack.c.b16 %v1315, %v1311
        %v1656 = vpack.c.b16 %v1316, %v1312
        %v1657 = vpack.c.b16 %v1321, %v1317
        %v1658 = vpack.c.b16 %v1322, %v1318
        %v1659 = vpack.c.b16 %v1323, %v1319
        %v1660 = vpack.c.b16 %v1324, %v1320
        %v1661 = vpack.c.b16 %v1329, %v1325
        %v1662 = vpack.c.b16 %v1330, %v1326
        %v1663 = vpack.c.b16 %v1331, %v1327
        %v1664 = vpack.c.b16 %v1332, %v1328
        %v1665 = vpack.c.b16 %v1337, %v1333
        %v1666 = vpack.c.b16 %v1338, %v1334
        %v1667 = vpack.c.b16 %v1339, %v1335
        %v1668 = vpack.c.b16 %v1340, %v1336
        %v1669 = vpack.c.b16 %v1345, %v1341
        %v1670 = vpack.c.b16 %v1346, %v1342
        %v1671 = vpack.c.b16 %v1347, %v1343
        %v1672 = vpack.c.b16 %v1348, %v1344
        %v1673 = vpack.c.b16 %v1353, %v1349
        %v1674 = vpack.c.b16 %v1354, %v1350
        %v1675 = vpack.c.b16 %v1355, %v1351
        %v1676 = vpack.c.b16 %v1356, %v1352
        %v1677 = vpack.c.b16 %v1361, %v1357
        %v1678 = vpack.c.b16 %v1362, %v1358
        %v1679 = vpack.c.b16 %v1363, %v1359
        %v1680 = vpack.c.b16 %v1364, %v1360
        %v1681 = vpack.c.b16 %v1369, %v1365
        %v1682 = vpack.c.b16 %v1370, %v1366
        %v1683 = vpack.c.b16 %v1371, %v1367
        %v1684 = vpack.c.b16 %v1372, %v1368
        %v1685 = vpack.c.b16 %v1377, %v1373
        %v1686 = vpack.c.b16 %v1378, %v1374
        %v1687 = vpack.c.b16 %v1379, %v1375
        %v1688 = vpack.c.b16 %v1380, %v1376
        %v1689 = vpack.c.b16 %v1385, %v1381
        %v1690 = vpack.c.b16 %v1386, %v1382
        %v1691 = vpack.c.b16 %v1387, %v1383
        %v1692 = vpack.c.b16 %v1388, %v1384
        %v1693 = vpack.c.b16 %v1393, %v1389
        %v1694 = vpack.c.b16 %v1394, %v1390
        %v1695 = vpack.c.b16 %v1395, %v1391
        %v1696 = vpack.c.b16 %v1396, %v1392
        %v1697 = vpack.c.b16 %v1401, %v1397
        %v1698 = vpack.c.b16 %v1402, %v1398
        %v1699 = vpack.c.b16 %v1403, %v1399
        %v1700 = vpack.c.b16 %v1404, %v1400
        %v1701 = vpack.c.b16 %v1409, %v1405
        %v1702 = vpack.c.b16 %v1410, %v1406
        %v1703 = vpack.c.b16 %v1411, %v1407
        %v1704 = vpack.c.b16 %v1412, %v1408
        %v1705 = vpack.c.b16 %v1417, %v1413
        %v1706 = vpack.c.b16 %v1418, %v1414
        %v1707 = vpack.c.b16 %v1419, %v1415
        %v1708 = vpack.c.b16 %v1420, %v1416
        %v1709 = vpack.c.b16 %v1425, %v1421
        %v1710 = vpack.c.b16 %v1426, %v1422
        %v1711 = vpack.c.b16 %v1427, %v1423
        %v1712 = vpack.c.b16 %v1428, %v1424
        %v1713 = vpack.c.b16 %v1433, %v1429
        %v1714 = vpack.c.b16 %v1434, %v1430
        %v1715 = vpack.c.b16 %v1435, %v1431
        %v1716 = vpack.c.b16 %v1436, %v1432
        %v1717 = vpack.c.b16 %v1441, %v1437
        %v1718 = vpack.c.b16 %v1442, %v1438
        %v1719 = vpack.c.b16 %v1443, %v1439
        %v1720 = vpack.c.b16 %v1444, %v1440
        %v1721 = vpack.c.b16 %v1449, %v1445
        %v1722 = vpack.c.b16 %v1450, %v1446
        %v1723 = vpack.c.b16 %v1451, %v1447
        %v1724 = vpack.c.b16 %v1452, %v1448
        %v1725 = vpack.c.b16 %v1457, %v1453
        %v1726 = vpack.c.b16 %v1458, %v1454
        %v1727 = vpack.c.b16 %v1459, %v1455
        %v1728 = vpack.c.b16 %v1460, %v1456
        %v1729 = vpack.c.b16 %v1465, %v1461
        %v1730 = vpack.c.b16 %v1466, %v1462
        %v1731 = vpack.c.b16 %v1467, %v1463
        %v1732 = vpack.c.b16 %v1468, %v1464
        %v1733 = vpack.c.b16 %v1473, %v1469
        %v1734 = vpack.c.b16 %v1474, %v1470
        %v1735 = vpack.c.b16 %v1475, %v1471
        %v1736 = vpack.c.b16 %v1476, %v1472
        %v1737 = vpack.c.b16 %v1481, %v1477
        %v1738 = vpack.c.b16 %v1482, %v1478
        %v1739 = vpack.c.b16 %v1483, %v1479
        %v1740 = vpack.c.b16 %v1484, %v1480
        %1997 = vmatprep.subr.bf16.mxu0 %v1486
        %1998 = vmatpush1.bf16.msra.mxu0 %v1485
        %1999 = vmatprep.subr.bf16.mxu0 %v1490
        %2000 = vmatpush1.bf16.msra.mxu0 %v1489
        %2001 = vmatprep.subr.bf16.mxu0 %v1494
        %2002 = vmatpush1.bf16.msra.mxu0 %v1493
        %2003 = vmatprep.subr.bf16.mxu0 %v1498
        %2004 = vmatpush1.bf16.msra.mxu0 %v1497
        %2005 = vmatprep.subr.bf16.mxu0 %v1502
        %2006 = vmatpush1.bf16.msra.mxu0 %v1501
        %2007 = vmatprep.subr.bf16.mxu0 %v1506
        %2008 = vmatpush1.bf16.msra.mxu0 %v1505
        %2009 = vmatprep.subr.bf16.mxu0 %v1510
        %2010 = vmatpush1.bf16.msra.mxu0 %v1509
        %2011 = vmatprep.subr.bf16.mxu0 %v1514
        %2012 = vmatpush1.bf16.msra.mxu0 %v1513
        %2013 = vmatprep.subr.bf16.mxu0 %v1518
        %2014 = vmatpush1.bf16.msra.mxu0 %v1517
        %2015 = vmatprep.subr.bf16.mxu0 %v1522
        %2016 = vmatpush1.bf16.msra.mxu0 %v1521
        %2017 = vmatprep.subr.bf16.mxu0 %v1526
        %2018 = vmatpush1.bf16.msra.mxu0 %v1525
        %2019 = vmatprep.subr.bf16.mxu0 %v1530
        %2020 = vmatpush1.bf16.msra.mxu0 %v1529
        %2021 = vmatprep.subr.bf16.mxu0 %v1534
        %2022 = vmatpush1.bf16.msra.mxu0 %v1533
        %2023 = vmatprep.subr.bf16.mxu0 %v1538
        %2024 = vmatpush1.bf16.msra.mxu0 %v1537
        %2025 = vmatprep.subr.bf16.mxu0 %v1542
        %2026 = vmatpush1.bf16.msra.mxu0 %v1541
        %2027 = vmatprep.subr.bf16.mxu0 %v1546
        %2028 = vmatpush1.bf16.msra.mxu0 %v1545
        %2029 = vmatprep.mubr.bf16.mxu0 %v686
        %2030 = vmatmul.mubr.bf16.gmra.mrb[0].mxu0 %v685
        %v2031 = vpop.f32.mrb[0].mxu0
        %v2032 = vadd.f32 0.0, %v2031
        %v2033 = vpop.f32.mrb[0].mxu0
        %v2034 = vadd.f32 0.0, %v2033
        %v2035 = vpop.f32.mrb[0].mxu0
        %v2036 = vadd.f32 0.0, %v2035
        %v2037 = vpop.f32.mrb[0].mxu0
        %v2038 = vadd.f32 0.0, %v2037
        %2039 = vmatprep.mubr.bf16.mxu0 %v694
        %2040 = vmatmul.mubr.bf16.gmra.mrb[0].mxu0 %v693
        %v2041 = vpop.f32.mrb[0].mxu0
        %v2042 = vadd.f32 0.0, %v2041
        %v2043 = vpop.f32.mrb[0].mxu0
        %v2044 = vadd.f32 0.0, %v2043
        %v2045 = vpop.f32.mrb[0].mxu0
        %v2046 = vadd.f32 0.0, %v2045
        %v2047 = vpop.f32.mrb[0].mxu0
        %v2048 = vadd.f32 0.0, %v2047
        %2049 = vdwg.mxu0
        %2050 = vmatprep.subr.bf16.mxu0 %v1550
        %2051 = vmatpush1.bf16.msra.mxu0 %v1549
        %2052 = vmatprep.subr.bf16.mxu0 %v1554
        %2053 = vmatpush1.bf16.msra.mxu0 %v1553
        %2054 = vmatprep.subr.bf16.mxu0 %v1558
        %2055 = vmatpush1.bf16.msra.mxu0 %v1557
        %2056 = vmatprep.subr.bf16.mxu0 %v1562
        %2057 = vmatpush1.bf16.msra.mxu0 %v1561
        %2058 = vmatprep.subr.bf16.mxu0 %v1566
        %2059 = vmatpush1.bf16.msra.mxu0 %v1565
        %2060 = vmatprep.subr.bf16.mxu0 %v1570
        %2061 = vmatpush1.bf16.msra.mxu0 %v1569
        %2062 = vmatprep.subr.bf16.mxu0 %v1574
        %2063 = vmatpush1.bf16.msra.mxu0 %v1573
        %2064 = vmatprep.subr.bf16.mxu0 %v1578
        %2065 = vmatpush1.bf16.msra.mxu0 %v1577
        %2066 = vmatprep.subr.bf16.mxu0 %v1582
        %2067 = vmatpush1.bf16.msra.mxu0 %v1581
        %2068 = vmatprep.subr.bf16.mxu0 %v1586
        %2069 = vmatpush1.bf16.msra.mxu0 %v1585
        %2070 = vmatprep.subr.bf16.mxu0 %v1590
        %2071 = vmatpush1.bf16.msra.mxu0 %v1589
        %2072 = vmatprep.subr.bf16.mxu0 %v1594
        %2073 = vmatpush1.bf16.msra.mxu0 %v1593
        %2074 = vmatprep.subr.bf16.mxu0 %v1598
        %2075 = vmatpush1.bf16.msra.mxu0 %v1597
        %2076 = vmatprep.subr.bf16.mxu0 %v1602
        %2077 = vmatpush1.bf16.msra.mxu0 %v1601
        %2078 = vmatprep.subr.bf16.mxu0 %v1606
        %2079 = vmatpush1.bf16.msra.mxu0 %v1605
        %2080 = vmatprep.subr.bf16.mxu0 %v1610
        %2081 = vmatpush1.bf16.msra.mxu0 %v1609
        %2082 = vmatprep.mubr.bf16.mxu0 %v688
        %2083 = vmatmul.mubr.bf16.gmra.mrb[0].mxu0 %v687
        %v2084 = vpop.f32.mrb[0].mxu0
        %v2085 = vadd.f32 %v2032, %v2084
        %v2086 = vpop.f32.mrb[0].mxu0
        %v2087 = vadd.f32 %v2034, %v2086
        %v2088 = vpop.f32.mrb[0].mxu0
        %v2089 = vadd.f32 %v2036, %v2088
        %v2090 = vpop.f32.mrb[0].mxu0
        %v2091 = vadd.f32 %v2038, %v2090
        %2092 = vmatprep.mubr.bf16.mxu0 %v696
        %2093 = vmatmul.mubr.bf16.gmra.mrb[0].mxu0 %v695
        %v2094 = vpop.f32.mrb[0].mxu0
        %v2095 = vadd.f32 %v2042, %v2094
        %v2096 = vpop.f32.mrb[0].mxu0
        %v2097 = vadd.f32 %v2044, %v2096
        %v2098 = vpop.f32.mrb[0].mxu0
        %v2099 = vadd.f32 %v2046, %v2098
        %v2100 = vpop.f32.mrb[0].mxu0
        %v2101 = vadd.f32 %v2048, %v2100
        %2102 = vdwg.mxu0
        %2103 = vmatprep.subr.bf16.mxu0 %v1614
        %2104 = vmatpush1.bf16.msra.mxu0 %v1613
        %2105 = vmatprep.subr.bf16.mxu0 %v1618
        %2106 = vmatpush1.bf16.msra.mxu0 %v1617
        %2107 = vmatprep.subr.bf16.mxu0 %v1622
        %2108 = vmatpush1.bf16.msra.mxu0 %v1621
        %2109 = vmatprep.subr.bf16.mxu0 %v1626
        %2110 = vmatpush1.bf16.msra.mxu0 %v1625
        %2111 = vmatprep.subr.bf16.mxu0 %v1630
        %2112 = vmatpush1.bf16.msra.mxu0 %v1629
        %2113 = vmatprep.subr.bf16.mxu0 %v1634
        %2114 = vmatpush1.bf16.msra.mxu0 %v1633
        %2115 = vmatprep.subr.bf16.mxu0 %v1638
        %2116 = vmatpush1.bf16.msra.mxu0 %v1637
        %2117 = vmatprep.subr.bf16.mxu0 %v1642
        %2118 = vmatpush1.bf16.msra.mxu0 %v1641
        %2119 = vmatprep.subr.bf16.mxu0 %v1646
        %2120 = vmatpush1.bf16.msra.mxu0 %v1645
        %2121 = vmatprep.subr.bf16.mxu0 %v1650
        %2122 = vmatpush1.bf16.msra.mxu0 %v1649
        %2123 = vmatprep.subr.bf16.mxu0 %v1654
        %2124 = vmatpush1.bf16.msra.mxu0 %v1653
        %2125 = vmatprep.subr.bf16.mxu0 %v1658
        %2126 = vmatpush1.bf16.msra.mxu0 %v1657
        %2127 = vmatprep.subr.bf16.mxu0 %v1662
        %2128 = vmatpush1.bf16.msra.mxu0 %v1661
        %2129 = vmatprep.subr.bf16.mxu0 %v1666
        %2130 = vmatpush1.bf16.msra.mxu0 %v1665
        %2131 = vmatprep.subr.bf16.mxu0 %v1670
        %2132 = vmatpush1.bf16.msra.mxu0 %v1669
        %2133 = vmatprep.subr.bf16.mxu0 %v1674
        %2134 = vmatpush1.bf16.msra.mxu0 %v1673
        %2135 = vmatprep.mubr.bf16.mxu0 %v690
        %2136 = vmatmul.mubr.bf16.gmra.mrb[0].mxu0 %v689
        %v2137 = vpop.f32.mrb[0].mxu0
        %v2138 = vadd.f32 %v2085, %v2137
        %v2139 = vpop.f32.mrb[0].mxu0
        %v2140 = vadd.f32 %v2087, %v2139
        %v2141 = vpop.f32.mrb[0].mxu0
        %v2142 = vadd.f32 %v2089, %v2141
        %v2143 = vpop.f32.mrb[0].mxu0
        %v2144 = vadd.f32 %v2091, %v2143
        %2145 = vmatprep.mubr.bf16.mxu0 %v698
        %2146 = vmatmul.mubr.bf16.gmra.mrb[0].mxu0 %v697
        %v2147 = vpop.f32.mrb[0].mxu0
        %v2148 = vadd.f32 %v2095, %v2147
        %v2149 = vpop.f32.mrb[0].mxu0
        %v2150 = vadd.f32 %v2097, %v2149
        %v2151 = vpop.f32.mrb[0].mxu0
        %v2152 = vadd.f32 %v2099, %v2151
        %v2153 = vpop.f32.mrb[0].mxu0
        %v2154 = vadd.f32 %v2101, %v2153
        %2155 = vdwg.mxu0
        %2156 = vmatprep.subr.bf16.mxu0 %v1678
        %2157 = vmatpush1.bf16.msra.mxu0 %v1677
        %2158 = vmatprep.subr.bf16.mxu0 %v1682
        %2159 = vmatpush1.bf16.msra.mxu0 %v1681
        %2160 = vmatprep.subr.bf16.mxu0 %v1686
        %2161 = vmatpush1.bf16.msra.mxu0 %v1685
        %2162 = vmatprep.subr.bf16.mxu0 %v1690
        %2163 = vmatpush1.bf16.msra.mxu0 %v1689
        %2164 = vmatprep.subr.bf16.mxu0 %v1694
        %2165 = vmatpush1.bf16.msra.mxu0 %v1693
        %2166 = vmatprep.subr.bf16.mxu0 %v1698
        %2167 = vmatpush1.bf16.msra.mxu0 %v1697
        %2168 = vmatprep.subr.bf16.mxu0 %v1702
        %2169 = vmatpush1.bf16.msra.mxu0 %v1701
        %2170 = vmatprep.subr.bf16.mxu0 %v1706
        %2171 = vmatpush1.bf16.msra.mxu0 %v1705
        %2172 = vmatprep.subr.bf16.mxu0 %v1710
        %2173 = vmatpush1.bf16.msra.mxu0 %v1709
        %2174 = vmatprep.subr.bf16.mxu0 %v1714
        %2175 = vmatpush1.bf16.msra.mxu0 %v1713
        %2176 = vmatprep.subr.bf16.mxu0 %v1718
        %2177 = vmatpush1.bf16.msra.mxu0 %v1717
        %2178 = vmatprep.subr.bf16.mxu0 %v1722
        %2179 = vmatpush1.bf16.msra.mxu0 %v1721
        %2180 = vmatprep.subr.bf16.mxu0 %v1726
        %2181 = vmatpush1.bf16.msra.mxu0 %v1725
        %2182 = vmatprep.subr.bf16.mxu0 %v1730
        %2183 = vmatpush1.bf16.msra.mxu0 %v1729
        %2184 = vmatprep.subr.bf16.mxu0 %v1734
        %2185 = vmatpush1.bf16.msra.mxu0 %v1733
        %2186 = vmatprep.subr.bf16.mxu0 %v1738
        %2187 = vmatpush1.bf16.msra.mxu0 %v1737
        %2188 = vmatprep.mubr.bf16.mxu0 %v692
        %2189 = vmatmul.mubr.bf16.gmra.mrb[0].mxu0 %v691
        %v2190 = vpop.f32.mrb[0].mxu0
        %v2191 = vadd.f32 %v2138, %v2190
        %v2192 = vpop.f32.mrb[0].mxu0
        %v2193 = vadd.f32 %v2140, %v2192
        %v2194 = vpop.f32.mrb[0].mxu0
        %v2195 = vadd.f32 %v2142, %v2194
        %v2196 = vpop.f32.mrb[0].mxu0
        %v2197 = vadd.f32 %v2144, %v2196
        %2198 = vmatprep.mubr.bf16.mxu0 %v700
        %2199 = vmatmul.mubr.bf16.gmra.mrb[0].mxu0 %v699
        %v2200 = vpop.f32.mrb[0].mxu0
        %v2201 = vadd.f32 %v2148, %v2200
        %v2202 = vpop.f32.mrb[0].mxu0
        %v2203 = vadd.f32 %v2150, %v2202
        %v2204 = vpop.f32.mrb[0].mxu0
        %v2205 = vadd.f32 %v2152, %v2204
        %v2206 = vpop.f32.mrb[0].mxu0
        %v2207 = vadd.f32 %v2154, %v2206
        %2208 = vdwg.mxu0
        %2209 = vmatprep.subr.bf16.mxu0 %v1488
        %2210 = vmatpush1.bf16.msra.mxu0 %v1487
        %2211 = vmatprep.subr.bf16.mxu0 %v1492
        %2212 = vmatpush1.bf16.msra.mxu0 %v1491
        %2213 = vmatprep.subr.bf16.mxu0 %v1496
        %2214 = vmatpush1.bf16.msra.mxu0 %v1495
        %2215 = vmatprep.subr.bf16.mxu0 %v1500
        %2216 = vmatpush1.bf16.msra.mxu0 %v1499
        %2217 = vmatprep.subr.bf16.mxu0 %v1504
        %2218 = vmatpush1.bf16.msra.mxu0 %v1503
        %2219 = vmatprep.subr.bf16.mxu0 %v1508
        %2220 = vmatpush1.bf16.msra.mxu0 %v1507
        %2221 = vmatprep.subr.bf16.mxu0 %v1512
        %2222 = vmatpush1.bf16.msra.mxu0 %v1511
        %2223 = vmatprep.subr.bf16.mxu0 %v1516
        %2224 = vmatpush1.bf16.msra.mxu0 %v1515
        %2225 = vmatprep.subr.bf16.mxu0 %v1520
        %2226 = vmatpush1.bf16.msra.mxu0 %v1519
        %2227 = vmatprep.subr.bf16.mxu0 %v1524
        %2228 = vmatpush1.bf16.msra.mxu0 %v1523
        %2229 = vmatprep.subr.bf16.mxu0 %v1528
        %2230 = vmatpush1.bf16.msra.mxu0 %v1527
        %2231 = vmatprep.subr.bf16.mxu0 %v1532
        %2232 = vmatpush1.bf16.msra.mxu0 %v1531
        %2233 = vmatprep.subr.bf16.mxu0 %v1536
        %2234 = vmatpush1.bf16.msra.mxu0 %v1535
        %2235 = vmatprep.subr.bf16.mxu0 %v1540
        %2236 = vmatpush1.bf16.msra.mxu0 %v1539
        %2237 = vmatprep.subr.bf16.mxu0 %v1544
        %2238 = vmatpush1.bf16.msra.mxu0 %v1543
        %2239 = vmatprep.subr.bf16.mxu0 %v1548
        %2240 = vmatpush1.bf16.msra.mxu0 %v1547
        %2241 = vmatprep.mubr.bf16.mxu0 %v686
        %2242 = vmatmul.mubr.bf16.gmra.mrb[0].mxu0 %v685
        %v2243 = vpop.f32.mrb[0].mxu0
        %v2244 = vadd.f32 0.0, %v2243
        %v2245 = vpop.f32.mrb[0].mxu0
        %v2246 = vadd.f32 0.0, %v2245
        %v2247 = vpop.f32.mrb[0].mxu0
        %v2248 = vadd.f32 0.0, %v2247
        %v2249 = vpop.f32.mrb[0].mxu0
        %v2250 = vadd.f32 0.0, %v2249
        %2251 = vmatprep.mubr.bf16.mxu0 %v694
        %2252 = vmatmul.mubr.bf16.gmra.mrb[0].mxu0 %v693
        %v2253 = vpop.f32.mrb[0].mxu0
        %v2254 = vadd.f32 0.0, %v2253
        %v2255 = vpop.f32.mrb[0].mxu0
        %v2256 = vadd.f32 0.0, %v2255
        %v2257 = vpop.f32.mrb[0].mxu0
        %v2258 = vadd.f32 0.0, %v2257
        %v2259 = vpop.f32.mrb[0].mxu0
        %v2260 = vadd.f32 0.0, %v2259
        %2261 = vdwg.mxu0
        %2262 = vmatprep.subr.bf16.mxu0 %v1552
        %2263 = vmatpush1.bf16.msra.mxu0 %v1551
        %2264 = vmatprep.subr.bf16.mxu0 %v1556
        %2265 = vmatpush1.bf16.msra.mxu0 %v1555
        %2266 = vmatprep.subr.bf16.mxu0 %v1560
        %2267 = vmatpush1.bf16.msra.mxu0 %v1559
        %2268 = vmatprep.subr.bf16.mxu0 %v1564
        %2269 = vmatpush1.bf16.msra.mxu0 %v1563
        %2270 = vmatprep.subr.bf16.mxu0 %v1568
        %2271 = vmatpush1.bf16.msra.mxu0 %v1567
        %2272 = vmatprep.subr.bf16.mxu0 %v1572
        %2273 = vmatpush1.bf16.msra.mxu0 %v1571
        %2274 = vmatprep.subr.bf16.mxu0 %v1576
        %2275 = vmatpush1.bf16.msra.mxu0 %v1575
        %2276 = vmatprep.subr.bf16.mxu0 %v1580
        %2277 = vmatpush1.bf16.msra.mxu0 %v1579
        %2278 = vmatprep.subr.bf16.mxu0 %v1584
        %2279 = vmatpush1.bf16.msra.mxu0 %v1583
        %2280 = vmatprep.subr.bf16.mxu0 %v1588
        %2281 = vmatpush1.bf16.msra.mxu0 %v1587
        %2282 = vmatprep.subr.bf16.mxu0 %v1592
        %2283 = vmatpush1.bf16.msra.mxu0 %v1591
        %2284 = vmatprep.subr.bf16.mxu0 %v1596
        %2285 = vmatpush1.bf16.msra.mxu0 %v1595
        %2286 = vmatprep.subr.bf16.mxu0 %v1600
        %2287 = vmatpush1.bf16.msra.mxu0 %v1599
        %2288 = vmatprep.subr.bf16.mxu0 %v1604
        %2289 = vmatpush1.bf16.msra.mxu0 %v1603
        %2290 = vmatprep.subr.bf16.mxu0 %v1608
        %2291 = vmatpush1.bf16.msra.mxu0 %v1607
        %2292 = vmatprep.subr.bf16.mxu0 %v1612
        %2293 = vmatpush1.bf16.msra.mxu0 %v1611
        %2294 = vmatprep.mubr.bf16.mxu0 %v688
        %2295 = vmatmul.mubr.bf16.gmra.mrb[0].mxu0 %v687
        %v2296 = vpop.f32.mrb[0].mxu0
        %v2297 = vadd.f32 %v2244, %v2296
        %v2298 = vpop.f32.mrb[0].mxu0
        %v2299 = vadd.f32 %v2246, %v2298
        %v2300 = vpop.f32.mrb[0].mxu0
        %v2301 = vadd.f32 %v2248, %v2300
        %v2302 = vpop.f32.mrb[0].mxu0
        %v2303 = vadd.f32 %v2250, %v2302
        %2304 = vmatprep.mubr.bf16.mxu0 %v696
        %2305 = vmatmul.mubr.bf16.gmra.mrb[0].mxu0 %v695
        %v2306 = vpop.f32.mrb[0].mxu0
        %v2307 = vadd.f32 %v2254, %v2306
        %v2308 = vpop.f32.mrb[0].mxu0
        %v2309 = vadd.f32 %v2256, %v2308
        %v2310 = vpop.f32.mrb[0].mxu0
        %v2311 = vadd.f32 %v2258, %v2310
        %v2312 = vpop.f32.mrb[0].mxu0
        %v2313 = vadd.f32 %v2260, %v2312
        %2314 = vdwg.mxu0
        %2315 = vmatprep.subr.bf16.mxu0 %v1616
        %2316 = vmatpush1.bf16.msra.mxu0 %v1615
        %2317 = vmatprep.subr.bf16.mxu0 %v1620
        %2318 = vmatpush1.bf16.msra.mxu0 %v1619
        %2319 = vmatprep.subr.bf16.mxu0 %v1624
        %2320 = vmatpush1.bf16.msra.mxu0 %v1623
        %2321 = vmatprep.subr.bf16.mxu0 %v1628
        %2322 = vmatpush1.bf16.msra.mxu0 %v1627
        %2323 = vmatprep.subr.bf16.mxu0 %v1632
        %2324 = vmatpush1.bf16.msra.mxu0 %v1631
        %2325 = vmatprep.subr.bf16.mxu0 %v1636
        %2326 = vmatpush1.bf16.msra.mxu0 %v1635
        %2327 = vmatprep.subr.bf16.mxu0 %v1640
        %2328 = vmatpush1.bf16.msra.mxu0 %v1639
        %2329 = vmatprep.subr.bf16.mxu0 %v1644
        %2330 = vmatpush1.bf16.msra.mxu0 %v1643
        %2331 = vmatprep.subr.bf16.mxu0 %v1648
        %2332 = vmatpush1.bf16.msra.mxu0 %v1647
        %2333 = vmatprep.subr.bf16.mxu0 %v1652
        %2334 = vmatpush1.bf16.msra.mxu0 %v1651
        %2335 = vmatprep.subr.bf16.mxu0 %v1656
        %2336 = vmatpush1.bf16.msra.mxu0 %v1655
        %2337 = vmatprep.subr.bf16.mxu0 %v1660
        %2338 = vmatpush1.bf16.msra.mxu0 %v1659
        %2339 = vmatprep.subr.bf16.mxu0 %v1664
        %2340 = vmatpush1.bf16.msra.mxu0 %v1663
        %2341 = vmatprep.subr.bf16.mxu0 %v1668
        %2342 = vmatpush1.bf16.msra.mxu0 %v1667
        %2343 = vmatprep.subr.bf16.mxu0 %v1672
        %2344 = vmatpush1.bf16.msra.mxu0 %v1671
        %2345 = vmatprep.subr.bf16.mxu0 %v1676
        %2346 = vmatpush1.bf16.msra.mxu0 %v1675
        %2347 = vmatprep.mubr.bf16.mxu0 %v690
        %2348 = vmatmul.mubr.bf16.gmra.mrb[0].mxu0 %v689
        %v2349 = vpop.f32.mrb[0].mxu0
        %v2350 = vadd.f32 %v2297, %v2349
        %v2351 = vpop.f32.mrb[0].mxu0
        %v2352 = vadd.f32 %v2299, %v2351
        %v2353 = vpop.f32.mrb[0].mxu0
        %v2354 = vadd.f32 %v2301, %v2353
        %v2355 = vpop.f32.mrb[0].mxu0
        %v2356 = vadd.f32 %v2303, %v2355
        %2357 = vmatprep.mubr.bf16.mxu0 %v698
        %2358 = vmatmul.mubr.bf16.gmra.mrb[0].mxu0 %v697
        %v2359 = vpop.f32.mrb[0].mxu0
        %v2360 = vadd.f32 %v2307, %v2359
        %v2361 = vpop.f32.mrb[0].mxu0
        %v2362 = vadd.f32 %v2309, %v2361
        %v2363 = vpop.f32.mrb[0].mxu0
        %v2364 = vadd.f32 %v2311, %v2363
        %v2365 = vpop.f32.mrb[0].mxu0
        %v2366 = vadd.f32 %v2313, %v2365
        %2367 = vdwg.mxu0
        %2368 = vmatprep.subr.bf16.mxu0 %v1680
        %2369 = vmatpush1.bf16.msra.mxu0 %v1679
        %2370 = vmatprep.subr.bf16.mxu0 %v1684
        %2371 = vmatpush1.bf16.msra.mxu0 %v1683
        %2372 = vmatprep.subr.bf16.mxu0 %v1688
        %2373 = vmatpush1.bf16.msra.mxu0 %v1687
        %2374 = vmatprep.subr.bf16.mxu0 %v1692
        %2375 = vmatpush1.bf16.msra.mxu0 %v1691
        %2376 = vmatprep.subr.bf16.mxu0 %v1696
        %2377 = vmatpush1.bf16.msra.mxu0 %v1695
        %2378 = vmatprep.subr.bf16.mxu0 %v1700
        %2379 = vmatpush1.bf16.msra.mxu0 %v1699
        %2380 = vmatprep.subr.bf16.mxu0 %v1704
        %2381 = vmatpush1.bf16.msra.mxu0 %v1703
        %2382 = vmatprep.subr.bf16.mxu0 %v1708
        %2383 = vmatpush1.bf16.msra.mxu0 %v1707
        %2384 = vmatprep.subr.bf16.mxu0 %v1712
        %2385 = vmatpush1.bf16.msra.mxu0 %v1711
        %2386 = vmatprep.subr.bf16.mxu0 %v1716
        %2387 = vmatpush1.bf16.msra.mxu0 %v1715
        %2388 = vmatprep.subr.bf16.mxu0 %v1720
        %2389 = vmatpush1.bf16.msra.mxu0 %v1719
        %2390 = vmatprep.subr.bf16.mxu0 %v1724
        %2391 = vmatpush1.bf16.msra.mxu0 %v1723
        %2392 = vmatprep.subr.bf16.mxu0 %v1728
        %2393 = vmatpush1.bf16.msra.mxu0 %v1727
        %2394 = vmatprep.subr.bf16.mxu0 %v1732
        %2395 = vmatpush1.bf16.msra.mxu0 %v1731
        %2396 = vmatprep.subr.bf16.mxu0 %v1736
        %2397 = vmatpush1.bf16.msra.mxu0 %v1735
        %2398 = vmatprep.subr.bf16.mxu0 %v1740
        %2399 = vmatpush1.bf16.msra.mxu0 %v1739
        %2400 = vmatprep.mubr.bf16.mxu0 %v692
        %2401 = vmatmul.mubr.bf16.gmra.mrb[0].mxu0 %v691
        %v2402 = vpop.f32.mrb[0].mxu0
        %v2403 = vadd.f32 %v2350, %v2402
        %v2404 = vpop.f32.mrb[0].mxu0
        %v2405 = vadd.f32 %v2352, %v2404
        %v2406 = vpop.f32.mrb[0].mxu0
        %v2407 = vadd.f32 %v2354, %v2406
        %v2408 = vpop.f32.mrb[0].mxu0
        %v2409 = vadd.f32 %v2356, %v2408
        %2410 = vmatprep.mubr.bf16.mxu0 %v700
        %2411 = vmatmul.mubr.bf16.gmra.mrb[0].mxu0 %v699
        %v2412 = vpop.f32.mrb[0].mxu0
        %v2413 = vadd.f32 %v2360, %v2412
        %v2414 = vpop.f32.mrb[0].mxu0
        %v2415 = vadd.f32 %v2362, %v2414
        %v2416 = vpop.f32.mrb[0].mxu0
        %v2417 = vadd.f32 %v2364, %v2416
        %v2418 = vpop.f32.mrb[0].mxu0
        %v2419 = vadd.f32 %v2366, %v2418
        %2420 = vdwg.mxu0
        %v2421 = vadd.f32 %v349, %v2191
        %v2422 = vadd.f32 %v350, %v2193
        %v2423 = vadd.f32 %v351, %v2403
        %v2424 = vadd.f32 %v352, %v2405
        %v2425 = vadd.f32 %v353, %v2195
        %v2426 = vadd.f32 %v354, %v2197
        %v2427 = vadd.f32 %v355, %v2407
        %v2428 = vadd.f32 %v356, %v2409
        %v2429 = vadd.f32 %v357, %v2201
        %v2430 = vadd.f32 %v358, %v2203
        %v2431 = vadd.f32 %v359, %v2413
        %v2432 = vadd.f32 %v360, %v2415
        %v2433 = vadd.f32 %v361, %v2205
        %v2434 = vadd.f32 %v362, %v2207
        %v2435 = vadd.f32 %v363, %v2417
        %v2436 = vadd.f32 %v364, %v2419
        %2437 = vst [vmem:[#allocation2] sm:$0xff] %v2421
        %2438 = vst [vmem:[#allocation2 + $0x8] sm:$0xff] %v2422
        %2439 = vst [vmem:[#allocation2 + $0x10] sm:$0xff] %v2423
        %2440 = vst [vmem:[#allocation2 + $0x18] sm:$0xff] %v2424
        %2441 = vst [vmem:[#allocation2 + $0x20] sm:$0xff] %v2425
        %2442 = vst [vmem:[#allocation2 + $0x28] sm:$0xff] %v2426
        %2443 = vst [vmem:[#allocation2 + $0x30] sm:$0xff] %v2427
        %2444 = vst [vmem:[#allocation2 + $0x38] sm:$0xff] %v2428
        %2445 = vst [vmem:[#allocation2 + $0x40] sm:$0xff] %v2429
        %2446 = vst [vmem:[#allocation2 + $0x48] sm:$0xff] %v2430
        %2447 = vst [vmem:[#allocation2 + $0x50] sm:$0xff] %v2431
        %2448 = vst [vmem:[#allocation2 + $0x58] sm:$0xff] %v2432
        %2449 = vst [vmem:[#allocation2 + $0x60] sm:$0xff] %v2433
        %2450 = vst [vmem:[#allocation2 + $0x68] sm:$0xff] %v2434
        %2451 = vst [vmem:[#allocation2 + $0x70] sm:$0xff] %v2435
        %2452 = vst [vmem:[#allocation2 + $0x78] sm:$0xff] %v2436
        %p2453 = scmp.eq.s32.totalorder %s30, 24
        // Predicated region
        $region57: #{tpu_custom_call.1} parent=35 // pred_check
          %p2454 = pneg %p2453
        $region58: #{tpu_custom_call.1} parent=35 // pred_check_branch
          %2456 = sbr.rel (%p2454) target = $region60
        $region59: #{tpu_custom_call.1} parent=35 // pred_region
          %v2457 = vld [vmem:[#allocation2] sm:$0xff]
          %v2458 = vld [vmem:[#allocation2 + $0x8] sm:$0xff]
          %v2459 = vld [vmem:[#allocation2 + $0x10] sm:$0xff]
          %v2460 = vld [vmem:[#allocation2 + $0x18] sm:$0xff]
          %v2461 = vld [vmem:[#allocation2 + $0x20] sm:$0xff]
          %v2462 = vld [vmem:[#allocation2 + $0x28] sm:$0xff]
          %v2463 = vld [vmem:[#allocation2 + $0x30] sm:$0xff]
          %v2464 = vld [vmem:[#allocation2 + $0x38] sm:$0xff]
          %v2465 = vld [vmem:[#allocation2 + $0x40] sm:$0xff]
          %v2466 = vld [vmem:[#allocation2 + $0x48] sm:$0xff]
          %v2467 = vld [vmem:[#allocation2 + $0x50] sm:$0xff]
          %v2468 = vld [vmem:[#allocation2 + $0x58] sm:$0xff]
          %v2469 = vld [vmem:[#allocation2 + $0x60] sm:$0xff]
          %v2470 = vld [vmem:[#allocation2 + $0x68] sm:$0xff]
          %v2471 = vld [vmem:[#allocation2 + $0x70] sm:$0xff]
          %v2472 = vld [vmem:[#allocation2 + $0x78] sm:$0xff]
          %v2473 = vld [vmem:[#allocation8] sm:$0xf]
          %v2475 = vlaneseq
          %v2476 = vshrl.u32 %v2475, 7
          %v2477 = vsub.s32 0, %v2476
          %v2478 = vrot.slane %v2473, %v2477
          %v2479 = vlaneseq
          %v2480 = vshrl.u32 %v2479, 7
          %v2481 = vsub.s32 1, %v2480
          %v2482 = vrot.slane %v2473, %v2481
          %v2483 = vlaneseq
          %v2484 = vshrl.u32 %v2483, 7
          %v2485 = vsub.s32 2, %v2484
          %v2486 = vrot.slane %v2473, %v2485
          %v2487 = vlaneseq
          %v2488 = vshrl.u32 %v2487, 7
          %v2489 = vsub.s32 3, %v2488
          %v2490 = vrot.slane %v2473, %v2489
          %v2495 = vmul.f32 %v2457, %v2478
          %v2496 = vmul.f32 %v2458, %v2482
          %v2497 = vmul.f32 %v2459, %v2486
          %v2498 = vmul.f32 %v2460, %v2490
          %v2499 = vmul.f32 %v2461, %v2478
          %v2500 = vmul.f32 %v2462, %v2482
          %v2501 = vmul.f32 %v2463, %v2486
          %v2502 = vmul.f32 %v2464, %v2490
          %v2503 = vmul.f32 %v2465, %v2478
          %v2504 = vmul.f32 %v2466, %v2482
          %v2505 = vmul.f32 %v2467, %v2486
          %v2506 = vmul.f32 %v2468, %v2490
          %v2507 = vmul.f32 %v2469, %v2478
          %v2508 = vmul.f32 %v2470, %v2482
          %v2509 = vmul.f32 %v2471, %v2486
          %v2510 = vmul.f32 %v2472, %v2490
          %v2511 = vld [vmem:[#allocation9] sm:$0xf]
          %v2513 = vlaneseq
          %v2514 = vshrl.u32 %v2513, 7
          %v2515 = vsub.s32 0, %v2514
          %v2516 = vrot.slane %v2511, %v2515
          %v2517 = vlaneseq
          %v2518 = vshrl.u32 %v2517, 7
          %v2519 = vsub.s32 1, %v2518
          %v2520 = vrot.slane %v2511, %v2519
          %v2521 = vlaneseq
          %v2522 = vshrl.u32 %v2521, 7
          %v2523 = vsub.s32 2, %v2522
          %v2524 = vrot.slane %v2511, %v2523
          %v2525 = vlaneseq
          %v2526 = vshrl.u32 %v2525, 7
          %v2527 = vsub.s32 3, %v2526
          %v2528 = vrot.slane %v2511, %v2527
          %v2533 = vadd.f32 %v2495, %v2516
          %v2534 = vadd.f32 %v2496, %v2520
          %v2535 = vadd.f32 %v2497, %v2524
          %v2536 = vadd.f32 %v2498, %v2528
          %v2537 = vadd.f32 %v2499, %v2516
          %v2538 = vadd.f32 %v2500, %v2520
          %v2539 = vadd.f32 %v2501, %v2524
          %v2540 = vadd.f32 %v2502, %v2528
          %v2541 = vadd.f32 %v2503, %v2516
          %v2542 = vadd.f32 %v2504, %v2520
          %v2543 = vadd.f32 %v2505, %v2524
          %v2544 = vadd.f32 %v2506, %v2528
          %v2545 = vadd.f32 %v2507, %v2516
          %v2546 = vadd.f32 %v2508, %v2520
          %v2547 = vadd.f32 %v2509, %v2524
          %v2548 = vadd.f32 %v2510, %v2528
          %v2549 = vmax.f32 %v2533, 0.0
          %v2550 = vmax.f32 %v2534, 0.0
          %v2551 = vmax.f32 %v2535, 0.0
          %v2552 = vmax.f32 %v2536, 0.0
          %v2553 = vmax.f32 %v2537, 0.0
          %v2554 = vmax.f32 %v2538, 0.0
          %v2555 = vmax.f32 %v2539, 0.0
          %v2556 = vmax.f32 %v2540, 0.0
          %v2557 = vmax.f32 %v2541, 0.0
          %v2558 = vmax.f32 %v2542, 0.0
          %v2559 = vmax.f32 %v2543, 0.0
          %v2560 = vmax.f32 %v2544, 0.0
          %v2561 = vmax.f32 %v2545, 0.0
          %v2562 = vmax.f32 %v2546, 0.0
          %v2563 = vmax.f32 %v2547, 0.0
          %v2564 = vmax.f32 %v2548, 0.0
          %v2565 = vpack.c.bf16 %v2553, %v2549
          %v2566 = vpack.c.bf16 %v2554, %v2550
          %v2567 = vpack.c.bf16 %v2555, %v2551
          %v2568 = vpack.c.bf16 %v2556, %v2552
          %v2569 = vpack.c.bf16 %v2561, %v2557
          %v2570 = vpack.c.bf16 %v2562, %v2558
          %v2571 = vpack.c.bf16 %v2563, %v2559
          %v2572 = vpack.c.bf16 %v2564, %v2560
          %v2581 = vunpack.c.l.b16 %v2565
          %v2582 = vunpack.c.l.b16 %v2566
          %v2583 = vunpack.c.l.b16 %v2567
          %v2584 = vunpack.c.l.b16 %v2568
          %v2585 = vunpack.c.h.b16 %v2565
          %v2586 = vunpack.c.h.b16 %v2566
          %v2587 = vunpack.c.h.b16 %v2567
          %v2588 = vunpack.c.h.b16 %v2568
          %v2589 = vunpack.c.l.b16 %v2569
          %v2590 = vunpack.c.l.b16 %v2570
          %v2591 = vunpack.c.l.b16 %v2571
          %v2592 = vunpack.c.l.b16 %v2572
          %v2593 = vunpack.c.h.b16 %v2569
          %v2594 = vunpack.c.h.b16 %v2570
          %v2595 = vunpack.c.h.b16 %v2571
          %v2596 = vunpack.c.h.b16 %v2572
          %v2597 = vpack.c.b16 %v2582, %v2581
          %v2598 = vpack.c.b16 %v2584, %v2583
          %v2599 = vpack.c.b16 %v2586, %v2585
          %v2600 = vpack.c.b16 %v2588, %v2587
          %v2601 = vpack.c.b16 %v2590, %v2589
          %v2602 = vpack.c.b16 %v2592, %v2591
          %v2603 = vpack.c.b16 %v2594, %v2593
          %v2604 = vpack.c.b16 %v2596, %v2595
          %2613 = vst [vmem:[#allocation11] sm:$0xff] %v2597
          %2614 = vst [vmem:[#allocation11 + $0x8] sm:$0xff] %v2598
          %2615 = vst [vmem:[#allocation11 + $0x10] sm:$0xff] %v2599
          %2616 = vst [vmem:[#allocation11 + $0x18] sm:$0xff] %v2600
          %2617 = vst [vmem:[#allocation11 + $0x20] sm:$0xff] %v2601
          %2618 = vst [vmem:[#allocation11 + $0x28] sm:$0xff] %v2602
          %2619 = vst [vmem:[#allocation11 + $0x30] sm:$0xff] %v2603
          %2620 = vst [vmem:[#allocation11 + $0x38] sm:$0xff] %v2604
        $region60: #{tpu_custom_call.1} parent=35 // pred_fallthru
          _
        // Predicated region
        $region61: #{tpu_custom_call.1} parent=35 // pred_check
          %p2621 = pneg %p170
        $region62: #{tpu_custom_call.1} parent=35 // pred_check_branch
          %2623 = sbr.rel (%p2621) target = $region64
        $region63: #{tpu_custom_call.1} parent=35 // pred_region
          %s2624 = smul.u32 4, %s28
          %s2625 = smul.u32 4, %s29
          %s2627 = ssub.s32 1024, 1024
          %2628 = vsyncadd [#allocation5], %s2627
          %s2629 = smul.addr %s2624, 4
          %s2630 = sadd.s32 %s2625, %s2629
          %s2631 = smul.addr %s2630, 64
          %s2632 = scalar_lea.hbm %s4, %s2631
          %s2633 = sshll.u32 [#allocation11], 4
          %s2634 = int_to_ptr.vmem [resolvable:$true] %s2633
          %2639 = dma.vmem_to_hbm [thread:$0]  %s2634, 1024, %s2632, [#allocation5], 256, 256, 16
        $region64: #{tpu_custom_call.1} parent=35 // pred_fallthru
          _
        // Predicated region
        $region65: #{tpu_custom_call.1} parent=35 // pred_check
          %p2640 = pneg %p170
        $region66: #{tpu_custom_call.1} parent=35 // pred_check_branch
          %2642 = sbr.rel (%p2640) target = $region68
        $region67: #{tpu_custom_call.1} parent=35 // pred_region
          %2643 = dma.done [#allocation5], 1024
        $region68: #{tpu_custom_call.1} parent=35 // pred_fallthru
          _
      $region36: #{tpu_custom_call.1} parent=5 // pred_fallthru
        _
      %p2644 = scmp.le.s32.totalorder 2, %s18
      // Predicated region
      $region69: #{tpu_custom_call.1} parent=5 // pred_check
        %p2645 = pneg %p2644
      $region70: #{tpu_custom_call.1} parent=5 // pred_check_branch
        %2647 = sbr.rel (%p2645) target = $region72
      $region71: #{tpu_custom_call.1} parent=5 // pred_region
        %s2648 = ssub.s32 %s18, 2
      $region72: #{tpu_custom_call.1} parent=5 // pred_fallthru
        _
    $region6: #{tpu_custom_call.1} parent=1 // loop_footer
      %s22 = sadd.s32 1, %s18
    $region7: #{tpu_custom_call.1} parent=1 // loop_footer_branch
      %17 = sbr.rel target = $region3
    $region8: #{tpu_custom_call.1} parent=1 // loop_exit
      _
    %2649 = vsyncpa [#allocation4], 1
    %s2650 = scalar_lea.sflag [#allocation4], 1
    %2651 = vsyncpa %s2650, 1
    %2652 = vsyncpa [#allocation7], 1
    %s2653 = scalar_lea.sflag [#allocation7], 1
    %2654 = vsyncpa %s2653, 1
    %2655 = vsyncpa [#allocation10], 1
    %2656 = vsyncpa [#allocation5], 1
    %s2657 = scalar_lea.sflag [#allocation5], 1
    %2658 = vsyncpa %s2657, 1

</llo_original>
